<compile_context>
chip_gen: v7x
topology: tpu7x:2x2x1
jax: 0.10.0
libtpu: 0.0.40
codegen_flags: <defaults>
</compile_context>

<pallas_src>
import functools
import math

import jax
import jax.numpy as jnp
from jax.experimental import pallas as pl
from jax.experimental.pallas import tpu as pltpu


def _mlp_kernel(*refs, n_layers, compute_dtype):
    """refs = (x, w1, b1, ..., wN, bN, out).

    x   : (tile*batch, in_dim)        float32
    w_i : (in_i, out_i)               compute_dtype (last layer padded to 128k lanes)
    b_i : (1, out_i)                  float32
    out : (tile, batch, out_pad)      float32   (softmax over axis=1 == PyTorch dim=0)
    """
    x_ref = refs[0]
    o_ref = refs[1 + 2 * n_layers]

    h = x_ref[...]  # f32 activations
    for li in range(n_layers):
        w = refs[1 + 2 * li][...]
        b = refs[2 + 2 * li][...]
        # MXU matmul; cast only the dot inputs to compute_dtype, accumulate f32.
        z = jnp.dot(h.astype(compute_dtype), w,
                    preferred_element_type=jnp.float32) + b
        h = jnp.maximum(z, 0.0) if li < n_layers - 1 else z

    # (tile*batch, out_pad) -> (tile, batch, out_pad): each original PyTorch
    # batch maps onto one 8-sublane group; softmax over dim=0 becomes a cheap
    # per-group axis=1 (XLU) reduction.
    z = h.reshape(o_ref.shape)
    m = jnp.max(z, axis=1, keepdims=True)
    e = jnp.exp(z - m)
    denom = jnp.sum(e, axis=1, keepdims=True)
    # Exact divide (NOT approx reciprocal) -- softmax columns sum to 1 to f32 eps.
    o_ref[...] = (e / denom).astype(o_ref.dtype)


def init_params(layer_sizes, key):
    """nn.Linear-style init, pre-laid-out for the kernel:
    W stored as (in_features, out_features), b as (1, out_features)."""
    params = []
    for i in range(len(layer_sizes) - 1):
        fan_in, fan_out = layer_sizes[i], layer_sizes[i + 1]
        key, kw, kb = jax.random.split(key, 3)
        bound = 1.0 / math.sqrt(fan_in)
        w_oi = jax.random.uniform(kw, (fan_out, fan_in), jnp.float32, -bound, bound)
        b = jax.random.uniform(kb, (fan_out,), jnp.float32, -bound, bound)
        params.append((jnp.asarray(w_oi.T), jnp.asarray(b)[None, :]))
    return params


def neuralnet4_forward_batched(xs, layer_sizes, params, *,
                               nb_tile=128, compute_dtype=jnp.float32):
    """Run NeuralNet4.forward on many independent batches in one pallas_call.

    xs: (num_batches, batch, layer_sizes[0]) f32 -- each xs[i] is one
        `inp_batch`; softmax(dim=0) is computed per slice, exactly like PyTorch.
    Returns (num_batches, batch, out_dim) f32.
    """
    num_batches, batch, in_dim = xs.shape
    assert in_dim == layer_sizes[0]
    n_layers = 3 if len(layer_sizes) > 3 else 2
    out_dim = layer_sizes[n_layers]
    out_pad = ((out_dim + 127) // 128) * 128  # lane-dense output columns

    # ---- choose how many independent batches to fold per grid step ----------
    tile = max(1, min(nb_tile, num_batches))
    if num_batches > 1:
        # keep >=2 balanced grid steps so both v7x TensorCores get work
        tile = min(tile, (num_batches + 1) // 2)
    # keep the folded 2-D row block sublane-aligned (tile*batch % 8 == 0)
    align = 8 // math.gcd(batch, 8)
    tile = max(align, (tile // align) * align)

    nb_pad = ((num_batches + tile - 1) // tile) * tile
    if nb_pad != num_batches:
        xs = jnp.pad(xs, ((0, nb_pad - num_batches), (0, 0), (0, 0)))
    # contiguous leading-axis collapse: free reshape in HBM
    x2d = xs.reshape(nb_pad * batch, in_dim)
    rows = tile * batch

    # ---- build kernel args / specs ------------------------------------------
    kernel_args = [x2d]
    in_specs = [pl.BlockSpec((rows, in_dim), lambda i: (i, 0))]
    for li in range(n_layers):
        w, b = params[li]
        w = w.astype(compute_dtype)
        b = b.astype(jnp.float32)
        if li == n_layers - 1 and out_pad != out_dim:
            # zero-pad final layer so the output store is an unmasked 128-lane vst
            w = jnp.pad(w, ((0, 0), (0, out_pad - out_dim)))
            b = jnp.pad(b, ((0, 0), (0, out_pad - out_dim)))
        kernel_args.append(w)
        # Constant index_map -> weights/biases DMA'd once, resident in VMEM.
        # (When hidden sizes grow, add pipeline_mode=pl.Buffered(1) here to
        #  single-buffer these never-changing blocks on v7x's 64 MiB VMEM.)
        in_specs.append(pl.BlockSpec(w.shape, lambda i: (0, 0)))
        kernel_args.append(b)
        in_specs.append(pl.BlockSpec(b.shape, lambda i: (0, 0)))

    out_spec = pl.BlockSpec((tile, batch, out_pad), lambda i: (i, 0, 0))
    kernel = functools.partial(_mlp_kernel, n_layers=n_layers,
                               compute_dtype=compute_dtype)

    out = pl.pallas_call(
        kernel,
        out_shape=jax.ShapeDtypeStruct((nb_pad, batch, out_pad), jnp.float32),
        grid=(nb_pad // tile,),
        in_specs=in_specs,
        out_specs=out_spec,
        compiler_params=pltpu.CompilerParams(
            dimension_semantics=("parallel",),   # independent batches
            vmem_limit_bytes=48 * 1024 * 1024,   # explicit, leaves headroom on v7x
        ),
    )(*kernel_args)
    return out[:num_batches, :, :out_dim]


def neuralnet4_forward(x, layer_sizes, params, **kw):
    """Single-batch forward (exactly NeuralNet4.forward): x is (batch, in_dim)."""
    return neuralnet4_forward_batched(x[None], layer_sizes, params, **kw)[0]


def _reference_forward(x, layer_sizes, params, compute_dtype=jnp.float32):
    """Pure-JAX reference, precision-pinned so it matches the kernel on real HW."""
    n_layers = 3 if len(layer_sizes) > 3 else 2
    h = x
    for li in range(n_layers):
        w, b = params[li]
        z = jnp.dot(h.astype(compute_dtype), w.astype(compute_dtype),
                    preferred_element_type=jnp.float32,
                    precision=jax.lax.Precision.HIGHEST) + b.astype(jnp.float32)
        h = jnp.maximum(z, 0.0) if li < n_layers - 1 else z
    m = jnp.max(h, axis=0, keepdims=True)
    e = jnp.exp(h - m)
    return e / jnp.sum(e, axis=0, keepdims=True)
    # (nn.Sigmoid is defined in the module but never used in forward.)


if __name__ == "__main__":
    # --- 3-hidden-layer configuration (len(LayerSizes) > 3 branch) ------------
    layer_sizes = [16, 32, 24, 10]
    batch = 8
    num_batches = 64  # folded: 2 parallel grid steps of 32 batches (256 rows each)

    key = jax.random.PRNGKey(0)
    key, kx, kp = jax.random.split(key, 3)
    xs = jax.random.normal(kx, (num_batches, batch, layer_sizes[0]), jnp.float32)
    params = init_params(layer_sizes, kp)

    fwd = jax.jit(functools.partial(neuralnet4_forward_batched,
                                    layer_sizes=layer_sizes, params=params,
                                    nb_tile=64))
    out = fwd(xs)
    jax.block_until_ready(out)
    assert out.shape == (num_batches, batch, layer_sizes[3])

    ref_fn = jax.jit(jax.vmap(functools.partial(
        _reference_forward, layer_sizes=layer_sizes, params=params)))
    refs = ref_fn(xs)
    assert jnp.allclose(out, refs, atol=1e-3, rtol=1e-3), "mismatch (f32 path)"
    # Softmax over dim=0: every column of every batch sums to 1.
    assert jnp.allclose(jnp.sum(out, axis=1),
                        jnp.ones((num_batches, layer_sizes[3])), atol=1e-3)

    # --- bf16 MXU path (v6e/v7x optimization); elementwise math stays f32 -----
    out_bf16 = jax.jit(functools.partial(
        neuralnet4_forward_batched, layer_sizes=layer_sizes, params=params,
        nb_tile=64, compute_dtype=jnp.bfloat16))(xs)
    refs_bf16 = jax.jit(jax.vmap(functools.partial(
        _reference_forward, layer_sizes=layer_sizes, params=params,
        compute_dtype=jnp.bfloat16)))(xs)
    jax.block_until_ready(out_bf16)
    assert jnp.allclose(out_bf16, refs_bf16, atol=2e-2, rtol=2e-2), "mismatch (bf16 path)"

    # --- 2-layer configuration (len(LayerSizes) == 3 branch) ------------------
    layer_sizes2 = [16, 32, 10]
    key, kx2, kp2 = jax.random.split(key, 3)
    params2 = init_params(layer_sizes2, kp2)
    xs2 = jax.random.normal(kx2, (5, batch, layer_sizes2[0]), jnp.float32)
    out2 = jax.jit(functools.partial(neuralnet4_forward_batched,
                                     layer_sizes=layer_sizes2, params=params2))(xs2)
    refs2 = jax.jit(jax.vmap(functools.partial(
        _reference_forward, layer_sizes=layer_sizes2, params=params2)))(xs2)
    jax.block_until_ready(out2)
    assert out2.shape == (5, batch, layer_sizes2[2])
    assert jnp.allclose(out2, refs2, atol=1e-3, rtol=1e-3), "mismatch (2-layer path)"

    # --- single-batch entry point (identical to the PyTorch call signature) ---
    single = jax.jit(functools.partial(neuralnet4_forward,
                                       layer_sizes=layer_sizes, params=params))(xs[0])
    jax.block_until_ready(single)
    assert jnp.allclose(single, _reference_forward(xs[0], layer_sizes, params),
                        atol=1e-3, rtol=1e-3), "mismatch (single-batch path)"

    print("KERNEL_OK")
</pallas_src>

<mosaic_0001>
module attributes {stable_mosaic.version = 11 : i64} {
  func.func @_mlp_kernel(%arg0: i32, %arg1: memref<256x16xf32, #tpu.memory_space<vmem>>, %arg2: memref<16x32xf32, #tpu.memory_space<vmem>>, %arg3: memref<1x32xf32, #tpu.memory_space<vmem>>, %arg4: memref<32x24xf32, #tpu.memory_space<vmem>>, %arg5: memref<1x24xf32, #tpu.memory_space<vmem>>, %arg6: memref<24x128xf32, #tpu.memory_space<vmem>>, %arg7: memref<1x128xf32, #tpu.memory_space<vmem>>, %arg8: memref<32x8x128xf32, #tpu.memory_space<vmem>>) attributes {dimension_semantics = [#tpu.dimension_semantics<parallel>], iteration_bounds = array<i64: 2>, scalar_prefetch = 0 : i64, scratch_operands = 0 : i64, tpu.core_type = #tpu.core_type<tc>, window_params = [{transform_indices = @transform_0, window_bounds = array<i64: 256, 16>}, {pipeline_mode = #tpu.pipeline_mode<synchronous>, transform_indices = @transform_1, window_bounds = array<i64: 16, 32>}, {pipeline_mode = #tpu.pipeline_mode<synchronous>, transform_indices = @transform_2, window_bounds = array<i64: 1, 32>}, {pipeline_mode = #tpu.pipeline_mode<synchronous>, transform_indices = @transform_3, window_bounds = array<i64: 32, 24>}, {pipeline_mode = #tpu.pipeline_mode<synchronous>, transform_indices = @transform_4, window_bounds = array<i64: 1, 24>}, {pipeline_mode = #tpu.pipeline_mode<synchronous>, transform_indices = @transform_5, window_bounds = array<i64: 24, 128>}, {pipeline_mode = #tpu.pipeline_mode<synchronous>, transform_indices = @transform_6, window_bounds = array<i64: 1, 128>}, {transform_indices = @transform_7, window_bounds = array<i64: 32, 8, 128>}]} {
    %c0 = arith.constant 0 : index
    %c0_0 = arith.constant 0 : index
    %0 = vector.load %arg1[%c0, %c0_0] : memref<256x16xf32, #tpu.memory_space<vmem>>, vector<256x16xf32>
    %c0_1 = arith.constant 0 : index
    %c0_2 = arith.constant 0 : index
    %1 = vector.load %arg2[%c0_1, %c0_2] : memref<16x32xf32, #tpu.memory_space<vmem>>, vector<16x32xf32>
    %c0_3 = arith.constant 0 : index
    %c0_4 = arith.constant 0 : index
    %2 = vector.load %arg3[%c0_3, %c0_4] : memref<1x32xf32, #tpu.memory_space<vmem>>, vector<1x32xf32>
    %cst = arith.constant dense<0.000000e+00> : vector<256x32xf32>
    %3 = tpu.matmul %0, %1, %cst {dimension_numbers = #tpu.dot_dimension_numbers<[1], [0], [0], [1], [0, 0, 1, 1], [], []>} : vector<256x16xf32>, vector<16x32xf32>, vector<256x32xf32> -> vector<256x32xf32>
    %4 = vector.broadcast %2 : vector<1x32xf32> to vector<256x32xf32>
    %5 = arith.addf %3, %4 : vector<256x32xf32>
    %cst_5 = arith.constant 0.000000e+00 : f32
    %6 = vector.broadcast %cst_5 : f32 to vector<256x32xf32>
    %7 = arith.maximumf %5, %6 : vector<256x32xf32>
    %c0_6 = arith.constant 0 : index
    %c0_7 = arith.constant 0 : index
    %8 = vector.load %arg4[%c0_6, %c0_7] : memref<32x24xf32, #tpu.memory_space<vmem>>, vector<32x24xf32>
    %c0_8 = arith.constant 0 : index
    %c0_9 = arith.constant 0 : index
    %9 = vector.load %arg5[%c0_8, %c0_9] : memref<1x24xf32, #tpu.memory_space<vmem>>, vector<1x24xf32>
    %cst_10 = arith.constant dense<0.000000e+00> : vector<256x24xf32>
    %10 = tpu.matmul %7, %8, %cst_10 {dimension_numbers = #tpu.dot_dimension_numbers<[1], [0], [0], [1], [0, 0, 1, 1], [], []>} : vector<256x32xf32>, vector<32x24xf32>, vector<256x24xf32> -> vector<256x24xf32>
    %11 = vector.broadcast %9 : vector<1x24xf32> to vector<256x24xf32>
    %12 = arith.addf %10, %11 : vector<256x24xf32>
    %cst_11 = arith.constant 0.000000e+00 : f32
    %13 = vector.broadcast %cst_11 : f32 to vector<256x24xf32>
    %14 = arith.maximumf %12, %13 : vector<256x24xf32>
    %c0_12 = arith.constant 0 : index
    %c0_13 = arith.constant 0 : index
    %15 = vector.load %arg6[%c0_12, %c0_13] : memref<24x128xf32, #tpu.memory_space<vmem>>, vector<24x128xf32>
    %c0_14 = arith.constant 0 : index
    %c0_15 = arith.constant 0 : index
    %16 = vector.load %arg7[%c0_14, %c0_15] : memref<1x128xf32, #tpu.memory_space<vmem>>, vector<1x128xf32>
    %cst_16 = arith.constant dense<0.000000e+00> : vector<256x128xf32>
    %17 = tpu.matmul %14, %15, %cst_16 {dimension_numbers = #tpu.dot_dimension_numbers<[1], [0], [0], [1], [0, 0, 1, 1], [], []>} : vector<256x24xf32>, vector<24x128xf32>, vector<256x128xf32> -> vector<256x128xf32>
    %18 = vector.broadcast %16 : vector<1x128xf32> to vector<256x128xf32>
    %19 = arith.addf %17, %18 : vector<256x128xf32>
    %20 = vector.shape_cast %19 : vector<256x128xf32> to vector<32x8x128xf32>
    %cst_17 = arith.constant dense<0xFF800000> : vector<32x128xf32>
    %21 = vector.multi_reduction <maximumf>, %20, %cst_17 [1] : vector<32x8x128xf32> to vector<32x128xf32>
    %22 = vector.shape_cast %21 : vector<32x128xf32> to vector<32x1x128xf32>
    %23 = vector.broadcast %22 : vector<32x1x128xf32> to vector<32x8x128xf32>
    %24 = arith.subf %20, %23 : vector<32x8x128xf32>
    %25 = math.exp %24 : vector<32x8x128xf32>
    %cst_18 = arith.constant dense<0.000000e+00> : vector<32x128xf32>
    %26 = vector.multi_reduction <add>, %25, %cst_18 [1] : vector<32x8x128xf32> to vector<32x128xf32>
    %27 = vector.shape_cast %26 : vector<32x128xf32> to vector<32x1x128xf32>
    %28 = vector.broadcast %27 : vector<32x1x128xf32> to vector<32x8x128xf32>
    %29 = arith.divf %25, %28 : vector<32x8x128xf32>
    %c0_19 = arith.constant 0 : index
    %c0_20 = arith.constant 0 : index
    %c0_21 = arith.constant 0 : index
    %30 = vector.load %arg8[%c0_19, %c0_20, %c0_21] : memref<32x8x128xf32, #tpu.memory_space<vmem>>, vector<32x8x128xf32>
    tpu.vector_store %arg8[%c0_19, %c0_20, %c0_21], %29 {strides = array<i32>} : memref<32x8x128xf32, #tpu.memory_space<vmem>>, vector<32x8x128xf32>,
    return
  }
  func.func @transform_0(%arg0: i32) -> (i32, i32) {
    %c0_i32 = arith.constant 0 : i32
    %c0_i32_0 = arith.constant 0 : i32
    return %arg0, %c0_i32 : i32, i32
  }
  func.func @transform_1(%arg0: i32) -> (i32, i32) {
    %c0_i32 = arith.constant 0 : i32
    %c0_i32_0 = arith.constant 0 : i32
    %c0_i32_1 = arith.constant 0 : i32
    return %c0_i32, %c0_i32_0 : i32, i32
  }
  func.func @transform_2(%arg0: i32) -> (i32, i32) {
    %c0_i32 = arith.constant 0 : i32
    %c0_i32_0 = arith.constant 0 : i32
    %c0_i32_1 = arith.constant 0 : i32
    return %c0_i32, %c0_i32_0 : i32, i32
  }
  func.func @transform_3(%arg0: i32) -> (i32, i32) {
    %c0_i32 = arith.constant 0 : i32
    %c0_i32_0 = arith.constant 0 : i32
    %c0_i32_1 = arith.constant 0 : i32
    return %c0_i32, %c0_i32_0 : i32, i32
  }
  func.func @transform_4(%arg0: i32) -> (i32, i32) {
    %c0_i32 = arith.constant 0 : i32
    %c0_i32_0 = arith.constant 0 : i32
    %c0_i32_1 = arith.constant 0 : i32
    return %c0_i32, %c0_i32_0 : i32, i32
  }
  func.func @transform_5(%arg0: i32) -> (i32, i32) {
    %c0_i32 = arith.constant 0 : i32
    %c0_i32_0 = arith.constant 0 : i32
    %c0_i32_1 = arith.constant 0 : i32
    return %c0_i32, %c0_i32_0 : i32, i32
  }
  func.func @transform_6(%arg0: i32) -> (i32, i32) {
    %c0_i32 = arith.constant 0 : i32
    %c0_i32_0 = arith.constant 0 : i32
    %c0_i32_1 = arith.constant 0 : i32
    return %c0_i32, %c0_i32_0 : i32, i32
  }
  func.func @transform_7(%arg0: i32) -> (i32, i32, i32) {
    %c0_i32 = arith.constant 0 : i32
    %c0_i32_0 = arith.constant 0 : i32
    %c0_i32_1 = arith.constant 0 : i32
    return %arg0, %c0_i32, %c0_i32_0 : i32, i32, i32
  }
}

</mosaic_0001>

<llo_original>
// kernel: neuralnet4_forward_batched.1
$region0: #{neuralnet4_forward_batched.1}
  #allocation0 [shape = 'u32[]', space=smem, size = 0x4, offset = 0x4, fixed_abs, tag = 'smem constant byte address 0x4 - core index']
  #allocation1 [shape = 'u32[144,128]{1,0:T(1,128)}', space=vmem, size = 0x12000, scoped, tag = 'internal scratch']
  %s0 = inlined_call_operand.vmem [shape: f32[512,16], index: 0, kind: input, shape index: {}]
  %s1 = inlined_call_operand.vmem [shape: f32[16,32], index: 1, kind: input, shape index: {}]
  %s2 = inlined_call_operand.vmem [shape: f32[1,32], index: 2, kind: input, shape index: {}]
  %s3 = inlined_call_operand.vmem [shape: f32[32,24], index: 3, kind: input, shape index: {}]
  %s4 = inlined_call_operand.vmem [shape: f32[1,24], index: 4, kind: input, shape index: {}]
  %s5 = inlined_call_operand.vmem [shape: f32[24,128], index: 5, kind: input, shape index: {}]
  %s6 = inlined_call_operand.vmem [shape: f32[1,128], index: 6, kind: input, shape index: {}]
  %s7 = inlined_call_operand.vmem [shape: f32[64,8,128], index: 7, kind: output, shape index: {}]
  %s8 = sld [smem:[#allocation0]]
  $region61: #{neuralnet4_forward_batched.1} parent=0
    _
  %s10 = ssub.s32 1, %s8
  %s11 = scalar_select 0, %s10, %s8
  loop: start=0, step=1, limit=4
  $region2: #{neuralnet4_forward_batched.1} parent=0 // loop_pre_header
    _
  $region3: #{neuralnet4_forward_batched.1} parent=0 // loop_header
    %s13 = sphi 0, %s17
    %p14 = scmp.ge.s32.totalorder %s13, 4
    %s23 = sphi 0, %s25
    %s26 = sphi 0, %s23
    %s27 = sphi 0, %s26
    %s43 = sphi 0, %s27
    %s47 = sphi 0, %s47
    %s49 = sphi 0, %s47
    %s50 = sphi 0, %s49
    %s64 = sphi 0, %s50
    %s68 = sphi 0, %s68
    %s70 = sphi 0, %s68
    %s71 = sphi 0, %s70
    %s85 = sphi 0, %s71
    %s89 = sphi 0, %s89
    %s91 = sphi 0, %s89
    %s92 = sphi 0, %s91
    %s106 = sphi 0, %s92
    %s110 = sphi 0, %s110
    %s112 = sphi 0, %s110
    %s113 = sphi 0, %s112
    %s127 = sphi 0, %s113
    %s131 = sphi 0, %s131
    %s133 = sphi 0, %s131
    %s134 = sphi 0, %s133
    %s148 = sphi 0, %s134
    %s152 = sphi 0, %s152
    %s154 = sphi 0, %s152
    %s155 = sphi 0, %s154
    %s169 = sphi 0, %s155
    %s175 = sphi 0, %s177
    %s178 = sphi 0, %s175
    %s179 = sphi 0, %s178
    %s195 = sphi 0, %s179
  $region4: #{neuralnet4_forward_batched.1} parent=0 // loop_header_branch
    %16 = sbr.rel (%p14) target = $region8
  $region5: #{neuralnet4_forward_batched.1} parent=0 // loop_body
    %s18 = ssub.s32 %s13, 1
    %s19 = ssub.s32 %s13, 2
    %s20 = sadd.s32 %s13, 1
    %s21 = ssub.s32 %s13, %s20
    %p22 = scmp.eq.s32.totalorder %s21, 0
    %s24 = sadd.s32 %s23, 1
    %s25 = scalar_select %p22, %s23, %s24
    %p28 = pneg %p22
    %p29 = scmp.eq.s32.totalorder %s13, 1
    %p30 = por %p28, %p29
    %p31 = scmp.ne.s32.totalorder %s23, %s26
    %p32 = scmp.eq.s32.totalorder %s13, 0
    %p33 = por %p31, %p32
    %p34 = scmp.ne.s32.totalorder %s23, %s26
    %p35 = scmp.eq.s32.totalorder %s18, 1
    %p36 = por %p34, %p35
    %p37 = scmp.ne.s32.totalorder %s26, %s27
    %p38 = scmp.eq.s32.totalorder %s18, 0
    %p39 = por %p37, %p38
    %p40 = scmp.ne.s32.totalorder %s26, %s27
    %p41 = scmp.eq.s32.totalorder %s19, 1
    %p42 = por %p40, %p41
    %p44 = scmp.ne.s32.totalorder %s27, %s43
    %p45 = scmp.eq.s32.totalorder %s19, 0
    %p46 = por %p44, %p45
    %s48 = sadd.s32 %s47, 1
    %p51 = scmp.eq.s32.totalorder %s13, 1
    %p52 = scmp.ne.s32.totalorder %s47, %s49
    %p53 = scmp.eq.s32.totalorder %s13, 0
    %p54 = por %p52, %p53
    %p55 = scmp.ne.s32.totalorder %s47, %s49
    %p56 = scmp.eq.s32.totalorder %s18, 1
    %p57 = por %p55, %p56
    %p58 = scmp.ne.s32.totalorder %s49, %s50
    %p59 = scmp.eq.s32.totalorder %s18, 0
    %p60 = por %p58, %p59
    %p61 = scmp.ne.s32.totalorder %s49, %s50
    %p62 = scmp.eq.s32.totalorder %s19, 1
    %p63 = por %p61, %p62
    %p65 = scmp.ne.s32.totalorder %s50, %s64
    %p66 = scmp.eq.s32.totalorder %s19, 0
    %p67 = por %p65, %p66
    %s69 = sadd.s32 %s68, 1
    %p72 = scmp.eq.s32.totalorder %s13, 1
    %p73 = scmp.ne.s32.totalorder %s68, %s70
    %p74 = scmp.eq.s32.totalorder %s13, 0
    %p75 = por %p73, %p74
    %p76 = scmp.ne.s32.totalorder %s68, %s70
    %p77 = scmp.eq.s32.totalorder %s18, 1
    %p78 = por %p76, %p77
    %p79 = scmp.ne.s32.totalorder %s70, %s71
    %p80 = scmp.eq.s32.totalorder %s18, 0
    %p81 = por %p79, %p80
    %p82 = scmp.ne.s32.totalorder %s70, %s71
    %p83 = scmp.eq.s32.totalorder %s19, 1
    %p84 = por %p82, %p83
    %p86 = scmp.ne.s32.totalorder %s71, %s85
    %p87 = scmp.eq.s32.totalorder %s19, 0
    %p88 = por %p86, %p87
    %s90 = sadd.s32 %s89, 1
    %p93 = scmp.eq.s32.totalorder %s13, 1
    %p94 = scmp.ne.s32.totalorder %s89, %s91
    %p95 = scmp.eq.s32.totalorder %s13, 0
    %p96 = por %p94, %p95
    %p97 = scmp.ne.s32.totalorder %s89, %s91
    %p98 = scmp.eq.s32.totalorder %s18, 1
    %p99 = por %p97, %p98
    %p100 = scmp.ne.s32.totalorder %s91, %s92
    %p101 = scmp.eq.s32.totalorder %s18, 0
    %p102 = por %p100, %p101
    %p103 = scmp.ne.s32.totalorder %s91, %s92
    %p104 = scmp.eq.s32.totalorder %s19, 1
    %p105 = por %p103, %p104
    %p107 = scmp.ne.s32.totalorder %s92, %s106
    %p108 = scmp.eq.s32.totalorder %s19, 0
    %p109 = por %p107, %p108
    %s111 = sadd.s32 %s110, 1
    %p114 = scmp.eq.s32.totalorder %s13, 1
    %p115 = scmp.ne.s32.totalorder %s110, %s112
    %p116 = scmp.eq.s32.totalorder %s13, 0
    %p117 = por %p115, %p116
    %p118 = scmp.ne.s32.totalorder %s110, %s112
    %p119 = scmp.eq.s32.totalorder %s18, 1
    %p120 = por %p118, %p119
    %p121 = scmp.ne.s32.totalorder %s112, %s113
    %p122 = scmp.eq.s32.totalorder %s18, 0
    %p123 = por %p121, %p122
    %p124 = scmp.ne.s32.totalorder %s112, %s113
    %p125 = scmp.eq.s32.totalorder %s19, 1
    %p126 = por %p124, %p125
    %p128 = scmp.ne.s32.totalorder %s113, %s127
    %p129 = scmp.eq.s32.totalorder %s19, 0
    %p130 = por %p128, %p129
    %s132 = sadd.s32 %s131, 1
    %p135 = scmp.eq.s32.totalorder %s13, 1
    %p136 = scmp.ne.s32.totalorder %s131, %s133
    %p137 = scmp.eq.s32.totalorder %s13, 0
    %p138 = por %p136, %p137
    %p139 = scmp.ne.s32.totalorder %s131, %s133
    %p140 = scmp.eq.s32.totalorder %s18, 1
    %p141 = por %p139, %p140
    %p142 = scmp.ne.s32.totalorder %s133, %s134
    %p143 = scmp.eq.s32.totalorder %s18, 0
    %p144 = por %p142, %p143
    %p145 = scmp.ne.s32.totalorder %s133, %s134
    %p146 = scmp.eq.s32.totalorder %s19, 1
    %p147 = por %p145, %p146
    %p149 = scmp.ne.s32.totalorder %s134, %s148
    %p150 = scmp.eq.s32.totalorder %s19, 0
    %p151 = por %p149, %p150
    %s153 = sadd.s32 %s152, 1
    %p156 = scmp.eq.s32.totalorder %s13, 1
    %p157 = scmp.ne.s32.totalorder %s152, %s154
    %p158 = scmp.eq.s32.totalorder %s13, 0
    %p159 = por %p157, %p158
    %p160 = scmp.ne.s32.totalorder %s152, %s154
    %p161 = scmp.eq.s32.totalorder %s18, 1
    %p162 = por %p160, %p161
    %p163 = scmp.ne.s32.totalorder %s154, %s155
    %p164 = scmp.eq.s32.totalorder %s18, 0
    %p165 = por %p163, %p164
    %p166 = scmp.ne.s32.totalorder %s154, %s155
    %p167 = scmp.eq.s32.totalorder %s19, 1
    %p168 = por %p166, %p167
    %p170 = scmp.ne.s32.totalorder %s155, %s169
    %p171 = scmp.eq.s32.totalorder %s19, 0
    %p172 = por %p170, %p171
    %s173 = ssub.s32 %s13, %s20
    %p174 = scmp.eq.s32.totalorder %s173, 0
    %s176 = sadd.s32 %s175, 1
    %s177 = scalar_select %p174, %s175, %s176
    %p180 = pneg %p174
    %p181 = scmp.eq.s32.totalorder %s13, 1
    %p182 = por %p180, %p181
    %p183 = scmp.ne.s32.totalorder %s175, %s178
    %p184 = scmp.eq.s32.totalorder %s13, 0
    %p185 = por %p183, %p184
    %p186 = scmp.ne.s32.totalorder %s175, %s178
    %p187 = scmp.eq.s32.totalorder %s18, 1
    %p188 = por %p186, %p187
    %p189 = scmp.ne.s32.totalorder %s178, %s179
    %p190 = scmp.eq.s32.totalorder %s18, 0
    %p191 = por %p189, %p190
    %p192 = scmp.ne.s32.totalorder %s178, %s179
    %p193 = scmp.eq.s32.totalorder %s19, 1
    %p194 = por %p192, %p193
    %p196 = scmp.ne.s32.totalorder %s179, %s195
    %p197 = scmp.eq.s32.totalorder %s19, 0
    %p198 = por %p196, %p197
    %p199 = scmp.le.s32.totalorder 1, %s13
    %p200 = scmp.lt.s32.totalorder %s13, 3
    %p201 = pnand %p199, %p200
    %p202 = pneg %p201
    // Predicated region
    $region9: #{neuralnet4_forward_batched.1} parent=5 // pred_check
      _
    $region10: #{neuralnet4_forward_batched.1} parent=5 // pred_check_branch
      %204 = sbr.rel (%p201) target = $region12
    $region11: #{neuralnet4_forward_batched.1} parent=5 // pred_region
      %s205 = ssub.s32 %s13, 1
      // Predicated region
      $region13: #{neuralnet4_forward_batched.1} parent=11 // pred_check
        %p206 = pneg %p60
      $region14: #{neuralnet4_forward_batched.1} parent=11 // pred_check_branch
        %208 = sbr.rel (%p206) target = $region16
      $region15: #{neuralnet4_forward_batched.1} parent=11 // pred_region
        _
      $region16: #{neuralnet4_forward_batched.1} parent=11 // pred_fallthru
        _
      // Predicated region
      $region17: #{neuralnet4_forward_batched.1} parent=11 // pred_check
        %p209 = pneg %p81
      $region18: #{neuralnet4_forward_batched.1} parent=11 // pred_check_branch
        %211 = sbr.rel (%p209) target = $region20
      $region19: #{neuralnet4_forward_batched.1} parent=11 // pred_region
        _
      $region20: #{neuralnet4_forward_batched.1} parent=11 // pred_fallthru
        _
      // Predicated region
      $region21: #{neuralnet4_forward_batched.1} parent=11 // pred_check
        %p212 = pneg %p102
      $region22: #{neuralnet4_forward_batched.1} parent=11 // pred_check_branch
        %214 = sbr.rel (%p212) target = $region24
      $region23: #{neuralnet4_forward_batched.1} parent=11 // pred_region
        _
      $region24: #{neuralnet4_forward_batched.1} parent=11 // pred_fallthru
        _
      // Predicated region
      $region25: #{neuralnet4_forward_batched.1} parent=11 // pred_check
        %p215 = pneg %p123
      $region26: #{neuralnet4_forward_batched.1} parent=11 // pred_check_branch
        %217 = sbr.rel (%p215) target = $region28
      $region27: #{neuralnet4_forward_batched.1} parent=11 // pred_region
        _
      $region28: #{neuralnet4_forward_batched.1} parent=11 // pred_fallthru
        _
      // Predicated region
      $region29: #{neuralnet4_forward_batched.1} parent=11 // pred_check
        %p218 = pneg %p144
      $region30: #{neuralnet4_forward_batched.1} parent=11 // pred_check_branch
        %220 = sbr.rel (%p218) target = $region32
      $region31: #{neuralnet4_forward_batched.1} parent=11 // pred_region
        _
      $region32: #{neuralnet4_forward_batched.1} parent=11 // pred_fallthru
        _
      // Predicated region
      $region33: #{neuralnet4_forward_batched.1} parent=11 // pred_check
        %p221 = pneg %p165
      $region34: #{neuralnet4_forward_batched.1} parent=11 // pred_check_branch
        %223 = sbr.rel (%p221) target = $region36
      $region35: #{neuralnet4_forward_batched.1} parent=11 // pred_region
        _
      $region36: #{neuralnet4_forward_batched.1} parent=11 // pred_fallthru
        _
    $region12: #{neuralnet4_forward_batched.1} parent=5 // pred_fallthru
      _
    %p224 = scmp.lt.s32.totalorder %s13, 2
    // Predicated region
    $region37: #{neuralnet4_forward_batched.1} parent=5 // pred_check
      %p225 = pneg %p224
    $region38: #{neuralnet4_forward_batched.1} parent=5 // pred_check_branch
      %227 = sbr.rel (%p225) target = $region40
    $region39: #{neuralnet4_forward_batched.1} parent=5 // pred_region
      // Predicated region
      $region41: #{neuralnet4_forward_batched.1} parent=39 // pred_check
        %p228 = pneg %p33
      $region42: #{neuralnet4_forward_batched.1} parent=39 // pred_check_branch
        %230 = sbr.rel (%p228) target = $region44
      $region43: #{neuralnet4_forward_batched.1} parent=39 // pred_region
        %s231 = smul.u32 32, %s13
        %p232 = scmp.lt.s32.totalorder %s231, 63
        %s233 = scalar_select %p232, %s231, 63
        %s234 = smul.addr %s233, 8
        %s235 = scalar_lea.vmem %s0, %s234
        %s236 = smul.u32 32, %s13
      $region44: #{neuralnet4_forward_batched.1} parent=39 // pred_fallthru
        _
    $region40: #{neuralnet4_forward_batched.1} parent=5 // pred_fallthru
      _
    %p237 = scmp.le.s32.totalorder 1, %s13
    %p238 = scmp.lt.s32.totalorder %s13, 3
    %p239 = pnand %p237, %p238
    %p240 = pneg %p239
    // Predicated region
    $region45: #{neuralnet4_forward_batched.1} parent=5 // pred_check
      _
    $region46: #{neuralnet4_forward_batched.1} parent=5 // pred_check_branch
      %242 = sbr.rel (%p239) target = $region48
    $region47: #{neuralnet4_forward_batched.1} parent=5 // pred_region
      %s243 = ssub.s32 %s13, 1
      %s244 = smul.u32 32, %s18
      %p245 = scmp.lt.s32.totalorder %s244, 63
      %s246 = scalar_select %p245, %s244, 63
      %s247 = smul.addr %s246, 8
      %s248 = scalar_lea.vmem %s0, %s247
      %p249 = pneg %p39
      %p250 = pneg %p36
      %p251 = pneg %p60
      %p252 = pneg %p57
      %p253 = pneg %p81
      %p254 = pneg %p78
      %p255 = pneg %p102
      %p256 = pneg %p99
      %p257 = pneg %p123
      %p258 = pneg %p120
      %p259 = pneg %p144
      %p260 = pneg %p141
      %p261 = pneg %p165
      %p262 = pneg %p162
      %p263 = pneg %p191
      %p264 = pneg %p188
      %s265 = smul.u32 32, %s18
      %p266 = scmp.lt.s32.totalorder %s265, 63
      %s267 = scalar_select %p266, %s265, 63
      %s268 = smul.addr %s267, 8
      %s269 = scalar_lea.vmem %s7, %s268
      %s270 = smul.u32 32, %s18
      %p271 = scmp.lt.s32.totalorder %s270, 63
      %s272 = scalar_select %p271, %s270, 63
      %s273 = smul.addr %s272, 8
      %s274 = scalar_lea.vmem %s0, %s273
      %s275 = smul.u32 32, %s18
      %s276 = smul.u32 32, %s18
      %p277 = scmp.lt.s32.totalorder %s276, 63
      %s278 = scalar_select %p277, %s276, 63
      %s279 = smul.addr %s278, 8
      %s280 = scalar_lea.vmem %s7, %s279
      %s281 = smul.u32 32, %s18
      %v282 = vld [vmem:[%s274] sm:$0xff]
      %v283 = vld [vmem:[%s274 + $0x8] sm:$0xff]
      %v284 = vld [vmem:[%s274 + $0x10] sm:$0xff]
      %v285 = vld [vmem:[%s274 + $0x18] sm:$0xff]
      %v286 = vld [vmem:[%s274 + $0x20] sm:$0xff]
      %v287 = vld [vmem:[%s274 + $0x28] sm:$0xff]
      %v288 = vld [vmem:[%s274 + $0x30] sm:$0xff]
      %v289 = vld [vmem:[%s274 + $0x38] sm:$0xff]
      %v290 = vld [vmem:[%s274 + $0x40] sm:$0xff]
      %v291 = vld [vmem:[%s274 + $0x48] sm:$0xff]
      %v292 = vld [vmem:[%s274 + $0x50] sm:$0xff]
      %v293 = vld [vmem:[%s274 + $0x58] sm:$0xff]
      %v294 = vld [vmem:[%s274 + $0x60] sm:$0xff]
      %v295 = vld [vmem:[%s274 + $0x68] sm:$0xff]
      %v296 = vld [vmem:[%s274 + $0x70] sm:$0xff]
      %v297 = vld [vmem:[%s274 + $0x78] sm:$0xff]
      %v298 = vld [vmem:[%s274 + $0x80] sm:$0xff]
      %v299 = vld [vmem:[%s274 + $0x88] sm:$0xff]
      %v300 = vld [vmem:[%s274 + $0x90] sm:$0xff]
      %v301 = vld [vmem:[%s274 + $0x98] sm:$0xff]
      %v302 = vld [vmem:[%s274 + $0xa0] sm:$0xff]
      %v303 = vld [vmem:[%s274 + $0xa8] sm:$0xff]
      %v304 = vld [vmem:[%s274 + $0xb0] sm:$0xff]
      %v305 = vld [vmem:[%s274 + $0xb8] sm:$0xff]
      %v306 = vld [vmem:[%s274 + $0xc0] sm:$0xff]
      %v307 = vld [vmem:[%s274 + $0xc8] sm:$0xff]
      %v308 = vld [vmem:[%s274 + $0xd0] sm:$0xff]
      %v309 = vld [vmem:[%s274 + $0xd8] sm:$0xff]
      %v310 = vld [vmem:[%s274 + $0xe0] sm:$0xff]
      %v311 = vld [vmem:[%s274 + $0xe8] sm:$0xff]
      %v312 = vld [vmem:[%s274 + $0xf0] sm:$0xff]
      %v313 = vld [vmem:[%s274 + $0xf8] sm:$0xff]
      %v314 = vld [vmem:[%s1] sm:$0xff]
      %v315 = vld [vmem:[%s1 + $0x8] sm:$0xff]
      %v316 = vld [vmem:[%s2] sm:$0x1]
      %v318 = vlaneseq
      %v319 = vshrl.u32 %v318, 7
      %v320 = vsub.s32 0, %v319
      %v321 = vrot.slane %v316, %v320
      %vm323 = vcmask 130048
      %v325 = vsel %vm323, %v282, 0
      %v328 = vsel %vm323, %v283, 0
      %v331 = vsel %vm323, %v284, 0
      %v334 = vsel %vm323, %v285, 0
      %v337 = vsel %vm323, %v286, 0
      %v340 = vsel %vm323, %v287, 0
      %v343 = vsel %vm323, %v288, 0
      %v346 = vsel %vm323, %v289, 0
      %v349 = vsel %vm323, %v290, 0
      %v352 = vsel %vm323, %v291, 0
      %v355 = vsel %vm323, %v292, 0
      %v358 = vsel %vm323, %v293, 0
      %v361 = vsel %vm323, %v294, 0
      %v364 = vsel %vm323, %v295, 0
      %v367 = vsel %vm323, %v296, 0
      %v370 = vsel %vm323, %v297, 0
      %v373 = vsel %vm323, %v298, 0
      %v376 = vsel %vm323, %v299, 0
      %v379 = vsel %vm323, %v300, 0
      %v382 = vsel %vm323, %v301, 0
      %v385 = vsel %vm323, %v302, 0
      %v388 = vsel %vm323, %v303, 0
      %v391 = vsel %vm323, %v304, 0
      %v394 = vsel %vm323, %v305, 0
      %v397 = vsel %vm323, %v306, 0
      %v400 = vsel %vm323, %v307, 0
      %v403 = vsel %vm323, %v308, 0
      %v406 = vsel %vm323, %v309, 0
      %v409 = vsel %vm323, %v310, 0
      %v412 = vsel %vm323, %v311, 0
      %v415 = vsel %vm323, %v312, 0
      %v418 = vsel %vm323, %v313, 0
      %420 = vmatprep.subr.mxu0 0.0
      %421 = vmatpush1.msra.mxu0 %v314
      %422 = vmatprep.subr.mxu0 0.0
      %423 = vmatpush1.msra.mxu0 %v315
      %424 = vmatprep.subr.mxu0 0.0
      %425 = vmatpush1.msra.mxu0 0.0
      %426 = vmatprep.subr.mxu0 0.0
      %427 = vmatpush1.msra.mxu0 0.0
      %428 = vmatprep.subr.mxu0 0.0
      %429 = vmatpush1.msra.mxu0 0.0
      %430 = vmatprep.subr.mxu0 0.0
      %431 = vmatpush1.msra.mxu0 0.0
      %432 = vmatprep.subr.mxu0 0.0
      %433 = vmatpush1.msra.mxu0 0.0
      %434 = vmatprep.subr.mxu0 0.0
      %435 = vmatpush1.msra.mxu0 0.0
      %436 = vmatprep.subr.mxu0 0.0
      %437 = vmatpush1.msra.mxu0 0.0
      %438 = vmatprep.subr.mxu0 0.0
      %439 = vmatpush1.msra.mxu0 0.0
      %440 = vmatprep.subr.mxu0 0.0
      %441 = vmatpush1.msra.mxu0 0.0
      %442 = vmatprep.subr.mxu0 0.0
      %443 = vmatpush1.msra.mxu0 0.0
      %444 = vmatprep.subr.mxu0 0.0
      %445 = vmatpush1.msra.mxu0 0.0
      %446 = vmatprep.subr.mxu0 0.0
      %447 = vmatpush1.msra.mxu0 0.0
      %448 = vmatprep.subr.mxu0 0.0
      %449 = vmatpush1.msra.mxu0 0.0
      %450 = vmatprep.subr.mxu0 0.0
      %451 = vmatpush1.msra.mxu0 0.0
      %452 = vmatprep.subr.mxu0 0.0
      %453 = vmatpush1.msra.mxu0 0.0
      %454 = vmatprep.subr.mxu0 0.0
      %455 = vmatpush1.msra.mxu0 0.0
      %456 = vmatprep.subr.mxu0 0.0
      %457 = vmatpush1.msra.mxu0 0.0
      %458 = vmatprep.subr.mxu0 0.0
      %459 = vmatpush1.msra.mxu0 0.0
      %460 = vmatprep.subr.mxu0 0.0
      %461 = vmatpush1.msra.mxu0 0.0
      %462 = vmatprep.subr.mxu0 0.0
      %463 = vmatpush1.msra.mxu0 0.0
      %464 = vmatprep.subr.mxu0 0.0
      %465 = vmatpush1.msra.mxu0 0.0
      %466 = vmatprep.subr.mxu0 0.0
      %467 = vmatpush1.msra.mxu0 0.0
      %468 = vmatprep.subr.mxu0 0.0
      %469 = vmatpush1.msra.mxu0 0.0
      %470 = vmatprep.subr.mxu0 0.0
      %471 = vmatpush1.msra.mxu0 0.0
      %472 = vmatprep.subr.mxu0 0.0
      %473 = vmatpush1.msra.mxu0 0.0
      %474 = vmatprep.subr.mxu0 0.0
      %475 = vmatpush1.msra.mxu0 0.0
      %476 = vmatprep.subr.mxu0 0.0
      %477 = vmatpush1.msra.mxu0 0.0
      %478 = vmatprep.subr.mxu0 0.0
      %479 = vmatpush1.msra.mxu0 0.0
      %480 = vmatprep.subr.mxu0 0.0
      %481 = vmatpush1.msra.mxu0 0.0
      %482 = vmatprep.subr.mxu0 0.0
      %483 = vmatpush1.msra.mxu0 0.0
      %484 = vmatprep.mubr.f32.mxu0 0.0
      %485 = vmatmul.mubr.f32.gmra.mrb[0].mxu0 %v325
      %v486 = vpop.f32.mrb[0].mxu0
      %v487 = vadd.f32 %v321, %v486
      %v488 = vpop.f32.mrb[0].mxu0
      %489 = vmatprep.mubr.f32.mxu0 0.0
      %490 = vmatmul.mubr.f32.gmra.mrb[0].mxu0 %v328
      %v491 = vpop.f32.mrb[0].mxu0
      %v492 = vadd.f32 %v321, %v491
      %v493 = vpop.f32.mrb[0].mxu0
      %494 = vmatprep.mubr.f32.mxu0 0.0
      %495 = vmatmul.mubr.f32.gmra.mrb[0].mxu0 %v331
      %v496 = vpop.f32.mrb[0].mxu0
      %v497 = vadd.f32 %v321, %v496
      %v498 = vpop.f32.mrb[0].mxu0
      %499 = vmatprep.mubr.f32.mxu0 0.0
      %500 = vmatmul.mubr.f32.gmra.mrb[0].mxu0 %v334
      %v501 = vpop.f32.mrb[0].mxu0
      %v502 = vadd.f32 %v321, %v501
      %v503 = vpop.f32.mrb[0].mxu0
      %504 = vmatprep.mubr.f32.mxu0 0.0
      %505 = vmatmul.mubr.f32.gmra.mrb[0].mxu0 %v337
      %v506 = vpop.f32.mrb[0].mxu0
      %v507 = vadd.f32 %v321, %v506
      %v508 = vpop.f32.mrb[0].mxu0
      %509 = vmatprep.mubr.f32.mxu0 0.0
      %510 = vmatmul.mubr.f32.gmra.mrb[0].mxu0 %v340
      %v511 = vpop.f32.mrb[0].mxu0
      %v512 = vadd.f32 %v321, %v511
      %v513 = vpop.f32.mrb[0].mxu0
      %514 = vmatprep.mubr.f32.mxu0 0.0
      %515 = vmatmul.mubr.f32.gmra.mrb[0].mxu0 %v343
      %v516 = vpop.f32.mrb[0].mxu0
      %v517 = vadd.f32 %v321, %v516
      %v518 = vpop.f32.mrb[0].mxu0
      %519 = vmatprep.mubr.f32.mxu0 0.0
      %520 = vmatmul.mubr.f32.gmra.mrb[0].mxu0 %v346
      %v521 = vpop.f32.mrb[0].mxu0
      %v522 = vadd.f32 %v321, %v521
      %v523 = vpop.f32.mrb[0].mxu0
      %524 = vmatprep.mubr.f32.mxu0 0.0
      %525 = vmatmul.mubr.f32.gmra.mrb[0].mxu0 %v349
      %v526 = vpop.f32.mrb[0].mxu0
      %v527 = vadd.f32 %v321, %v526
      %v528 = vpop.f32.mrb[0].mxu0
      %529 = vmatprep.mubr.f32.mxu0 0.0
      %530 = vmatmul.mubr.f32.gmra.mrb[0].mxu0 %v352
      %v531 = vpop.f32.mrb[0].mxu0
      %v532 = vadd.f32 %v321, %v531
      %v533 = vpop.f32.mrb[0].mxu0
      %534 = vmatprep.mubr.f32.mxu0 0.0
      %535 = vmatmul.mubr.f32.gmra.mrb[0].mxu0 %v355
      %v536 = vpop.f32.mrb[0].mxu0
      %v537 = vadd.f32 %v321, %v536
      %v538 = vpop.f32.mrb[0].mxu0
      %539 = vmatprep.mubr.f32.mxu0 0.0
      %540 = vmatmul.mubr.f32.gmra.mrb[0].mxu0 %v358
      %v541 = vpop.f32.mrb[0].mxu0
      %v542 = vadd.f32 %v321, %v541
      %v543 = vpop.f32.mrb[0].mxu0
      %544 = vmatprep.mubr.f32.mxu0 0.0
      %545 = vmatmul.mubr.f32.gmra.mrb[0].mxu0 %v361
      %v546 = vpop.f32.mrb[0].mxu0
      %v547 = vadd.f32 %v321, %v546
      %v548 = vpop.f32.mrb[0].mxu0
      %549 = vmatprep.mubr.f32.mxu0 0.0
      %550 = vmatmul.mubr.f32.gmra.mrb[0].mxu0 %v364
      %v551 = vpop.f32.mrb[0].mxu0
      %v552 = vadd.f32 %v321, %v551
      %v553 = vpop.f32.mrb[0].mxu0
      %554 = vmatprep.mubr.f32.mxu0 0.0
      %555 = vmatmul.mubr.f32.gmra.mrb[0].mxu0 %v367
      %v556 = vpop.f32.mrb[0].mxu0
      %v557 = vadd.f32 %v321, %v556
      %v558 = vpop.f32.mrb[0].mxu0
      %559 = vmatprep.mubr.f32.mxu0 0.0
      %560 = vmatmul.mubr.f32.gmra.mrb[0].mxu0 %v370
      %v561 = vpop.f32.mrb[0].mxu0
      %v562 = vadd.f32 %v321, %v561
      %v563 = vpop.f32.mrb[0].mxu0
      %564 = vmatprep.mubr.f32.mxu0 0.0
      %565 = vmatmul.mubr.f32.gmra.mrb[0].mxu0 %v373
      %v566 = vpop.f32.mrb[0].mxu0
      %v567 = vadd.f32 %v321, %v566
      %v568 = vpop.f32.mrb[0].mxu0
      %569 = vmatprep.mubr.f32.mxu0 0.0
      %570 = vmatmul.mubr.f32.gmra.mrb[0].mxu0 %v376
      %v571 = vpop.f32.mrb[0].mxu0
      %v572 = vadd.f32 %v321, %v571
      %v573 = vpop.f32.mrb[0].mxu0
      %574 = vmatprep.mubr.f32.mxu0 0.0
      %575 = vmatmul.mubr.f32.gmra.mrb[0].mxu0 %v379
      %v576 = vpop.f32.mrb[0].mxu0
      %v577 = vadd.f32 %v321, %v576
      %v578 = vpop.f32.mrb[0].mxu0
      %579 = vmatprep.mubr.f32.mxu0 0.0
      %580 = vmatmul.mubr.f32.gmra.mrb[0].mxu0 %v382
      %v581 = vpop.f32.mrb[0].mxu0
      %v582 = vadd.f32 %v321, %v581
      %v583 = vpop.f32.mrb[0].mxu0
      %584 = vmatprep.mubr.f32.mxu0 0.0
      %585 = vmatmul.mubr.f32.gmra.mrb[0].mxu0 %v385
      %v586 = vpop.f32.mrb[0].mxu0
      %v587 = vadd.f32 %v321, %v586
      %v588 = vpop.f32.mrb[0].mxu0
      %589 = vmatprep.mubr.f32.mxu0 0.0
      %590 = vmatmul.mubr.f32.gmra.mrb[0].mxu0 %v388
      %v591 = vpop.f32.mrb[0].mxu0
      %v592 = vadd.f32 %v321, %v591
      %v593 = vpop.f32.mrb[0].mxu0
      %594 = vmatprep.mubr.f32.mxu0 0.0
      %595 = vmatmul.mubr.f32.gmra.mrb[0].mxu0 %v391
      %v596 = vpop.f32.mrb[0].mxu0
      %v597 = vadd.f32 %v321, %v596
      %v598 = vpop.f32.mrb[0].mxu0
      %599 = vmatprep.mubr.f32.mxu0 0.0
      %600 = vmatmul.mubr.f32.gmra.mrb[0].mxu0 %v394
      %v601 = vpop.f32.mrb[0].mxu0
      %v602 = vadd.f32 %v321, %v601
      %v603 = vpop.f32.mrb[0].mxu0
      %604 = vmatprep.mubr.f32.mxu0 0.0
      %605 = vmatmul.mubr.f32.gmra.mrb[0].mxu0 %v397
      %v606 = vpop.f32.mrb[0].mxu0
      %v607 = vadd.f32 %v321, %v606
      %v608 = vpop.f32.mrb[0].mxu0
      %609 = vmatprep.mubr.f32.mxu0 0.0
      %610 = vmatmul.mubr.f32.gmra.mrb[0].mxu0 %v400
      %v611 = vpop.f32.mrb[0].mxu0
      %v612 = vadd.f32 %v321, %v611
      %v613 = vpop.f32.mrb[0].mxu0
      %614 = vmatprep.mubr.f32.mxu0 0.0
      %615 = vmatmul.mubr.f32.gmra.mrb[0].mxu0 %v403
      %v616 = vpop.f32.mrb[0].mxu0
      %v617 = vadd.f32 %v321, %v616
      %v618 = vpop.f32.mrb[0].mxu0
      %619 = vmatprep.mubr.f32.mxu0 0.0
      %620 = vmatmul.mubr.f32.gmra.mrb[0].mxu0 %v406
      %v621 = vpop.f32.mrb[0].mxu0
      %v622 = vadd.f32 %v321, %v621
      %v623 = vpop.f32.mrb[0].mxu0
      %624 = vmatprep.mubr.f32.mxu0 0.0
      %625 = vmatmul.mubr.f32.gmra.mrb[0].mxu0 %v409
      %v626 = vpop.f32.mrb[0].mxu0
      %v627 = vadd.f32 %v321, %v626
      %v628 = vpop.f32.mrb[0].mxu0
      %629 = vmatprep.mubr.f32.mxu0 0.0
      %630 = vmatmul.mubr.f32.gmra.mrb[0].mxu0 %v412
      %v631 = vpop.f32.mrb[0].mxu0
      %v632 = vadd.f32 %v321, %v631
      %v633 = vpop.f32.mrb[0].mxu0
      %634 = vmatprep.mubr.f32.mxu0 0.0
      %635 = vmatmul.mubr.f32.gmra.mrb[0].mxu0 %v415
      %v636 = vpop.f32.mrb[0].mxu0
      %v637 = vadd.f32 %v321, %v636
      %v638 = vpop.f32.mrb[0].mxu0
      %639 = vmatprep.mubr.f32.mxu0 0.0
      %640 = vmatmul.mubr.f32.gmra.mrb[0].mxu0 %v418
      %v641 = vpop.f32.mrb[0].mxu0
      %v642 = vadd.f32 %v321, %v641
      %v643 = vpop.f32.mrb[0].mxu0
      %644 = vdwg.mxu0
      %v645 = vmax.f32 %v487, 0.0
      %v646 = vmax.f32 %v492, 0.0
      %v647 = vmax.f32 %v497, 0.0
      %v648 = vmax.f32 %v502, 0.0
      %v649 = vmax.f32 %v507, 0.0
      %v650 = vmax.f32 %v512, 0.0
      %v651 = vmax.f32 %v517, 0.0
      %v652 = vmax.f32 %v522, 0.0
      %v653 = vmax.f32 %v527, 0.0
      %v654 = vmax.f32 %v532, 0.0
      %v655 = vmax.f32 %v537, 0.0
      %v656 = vmax.f32 %v542, 0.0
      %v657 = vmax.f32 %v547, 0.0
      %v658 = vmax.f32 %v552, 0.0
      %v659 = vmax.f32 %v557, 0.0
      %v660 = vmax.f32 %v562, 0.0
      %v661 = vmax.f32 %v567, 0.0
      %v662 = vmax.f32 %v572, 0.0
      %v663 = vmax.f32 %v577, 0.0
      %v664 = vmax.f32 %v582, 0.0
      %v665 = vmax.f32 %v587, 0.0
      %v666 = vmax.f32 %v592, 0.0
      %v667 = vmax.f32 %v597, 0.0
      %v668 = vmax.f32 %v602, 0.0
      %v669 = vmax.f32 %v607, 0.0
      %v670 = vmax.f32 %v612, 0.0
      %v671 = vmax.f32 %v617, 0.0
      %v672 = vmax.f32 %v622, 0.0
      %v673 = vmax.f32 %v627, 0.0
      %v674 = vmax.f32 %v632, 0.0
      %v675 = vmax.f32 %v637, 0.0
      %v676 = vmax.f32 %v642, 0.0
      %v677 = vld [vmem:[%s3] sm:$0xff]
      %v678 = vld [vmem:[%s3 + $0x8] sm:$0xff]
      %v679 = vld [vmem:[%s3 + $0x10] sm:$0xff]
      %v680 = vld [vmem:[%s3 + $0x18] sm:$0xff]
      %v681 = vld [vmem:[%s4] sm:$0x1]
      %v683 = vlaneseq
      %v684 = vshrl.u32 %v683, 7
      %v685 = vsub.s32 0, %v684
      %v686 = vrot.slane %v681, %v685
      %vm688 = vcmask 261120
      %v690 = vsel %vm688, %v645, 0
      %v693 = vsel %vm688, %v646, 0
      %v696 = vsel %vm688, %v647, 0
      %v699 = vsel %vm688, %v648, 0
      %v702 = vsel %vm688, %v649, 0
      %v705 = vsel %vm688, %v650, 0
      %v708 = vsel %vm688, %v651, 0
      %v711 = vsel %vm688, %v652, 0
      %v714 = vsel %vm688, %v653, 0
      %v717 = vsel %vm688, %v654, 0
      %v720 = vsel %vm688, %v655, 0
      %v723 = vsel %vm688, %v656, 0
      %v726 = vsel %vm688, %v657, 0
      %v729 = vsel %vm688, %v658, 0
      %v732 = vsel %vm688, %v659, 0
      %v735 = vsel %vm688, %v660, 0
      %v738 = vsel %vm688, %v661, 0
      %v741 = vsel %vm688, %v662, 0
      %v744 = vsel %vm688, %v663, 0
      %v747 = vsel %vm688, %v664, 0
      %v750 = vsel %vm688, %v665, 0
      %v753 = vsel %vm688, %v666, 0
      %v756 = vsel %vm688, %v667, 0
      %v759 = vsel %vm688, %v668, 0
      %v762 = vsel %vm688, %v669, 0
      %v765 = vsel %vm688, %v670, 0
      %v768 = vsel %vm688, %v671, 0
      %v771 = vsel %vm688, %v672, 0
      %v774 = vsel %vm688, %v673, 0
      %v777 = vsel %vm688, %v674, 0
      %v780 = vsel %vm688, %v675, 0
      %v783 = vsel %vm688, %v676, 0
      %785 = vmatprep.subr.mxu0 0.0
      %786 = vmatpush1.msra.mxu0 %v677
      %787 = vmatprep.subr.mxu0 0.0
      %788 = vmatpush1.msra.mxu0 %v678
      %789 = vmatprep.subr.mxu0 0.0
      %790 = vmatpush1.msra.mxu0 %v679
      %791 = vmatprep.subr.mxu0 0.0
      %792 = vmatpush1.msra.mxu0 %v680
      %793 = vmatprep.subr.mxu0 0.0
      %794 = vmatpush1.msra.mxu0 0.0
      %795 = vmatprep.subr.mxu0 0.0
      %796 = vmatpush1.msra.mxu0 0.0
      %797 = vmatprep.subr.mxu0 0.0
      %798 = vmatpush1.msra.mxu0 0.0
      %799 = vmatprep.subr.mxu0 0.0
      %800 = vmatpush1.msra.mxu0 0.0
      %801 = vmatprep.subr.mxu0 0.0
      %802 = vmatpush1.msra.mxu0 0.0
      %803 = vmatprep.subr.mxu0 0.0
      %804 = vmatpush1.msra.mxu0 0.0
      %805 = vmatprep.subr.mxu0 0.0
      %806 = vmatpush1.msra.mxu0 0.0
      %807 = vmatprep.subr.mxu0 0.0
      %808 = vmatpush1.msra.mxu0 0.0
      %809 = vmatprep.subr.mxu0 0.0
      %810 = vmatpush1.msra.mxu0 0.0
      %811 = vmatprep.subr.mxu0 0.0
      %812 = vmatpush1.msra.mxu0 0.0
      %813 = vmatprep.subr.mxu0 0.0
      %814 = vmatpush1.msra.mxu0 0.0
      %815 = vmatprep.subr.mxu0 0.0
      %816 = vmatpush1.msra.mxu0 0.0
      %817 = vmatprep.subr.mxu0 0.0
      %818 = vmatpush1.msra.mxu0 0.0
      %819 = vmatprep.subr.mxu0 0.0
      %820 = vmatpush1.msra.mxu0 0.0
      %821 = vmatprep.subr.mxu0 0.0
      %822 = vmatpush1.msra.mxu0 0.0
      %823 = vmatprep.subr.mxu0 0.0
      %824 = vmatpush1.msra.mxu0 0.0
      %825 = vmatprep.subr.mxu0 0.0
      %826 = vmatpush1.msra.mxu0 0.0
      %827 = vmatprep.subr.mxu0 0.0
      %828 = vmatpush1.msra.mxu0 0.0
      %829 = vmatprep.subr.mxu0 0.0
      %830 = vmatpush1.msra.mxu0 0.0
      %831 = vmatprep.subr.mxu0 0.0
      %832 = vmatpush1.msra.mxu0 0.0
      %833 = vmatprep.subr.mxu0 0.0
      %834 = vmatpush1.msra.mxu0 0.0
      %835 = vmatprep.subr.mxu0 0.0
      %836 = vmatpush1.msra.mxu0 0.0
      %837 = vmatprep.subr.mxu0 0.0
      %838 = vmatpush1.msra.mxu0 0.0
      %839 = vmatprep.subr.mxu0 0.0
      %840 = vmatpush1.msra.mxu0 0.0
      %841 = vmatprep.subr.mxu0 0.0
      %842 = vmatpush1.msra.mxu0 0.0
      %843 = vmatprep.subr.mxu0 0.0
      %844 = vmatpush1.msra.mxu0 0.0
      %845 = vmatprep.subr.mxu0 0.0
      %846 = vmatpush1.msra.mxu0 0.0
      %847 = vmatprep.subr.mxu0 0.0
      %848 = vmatpush1.msra.mxu0 0.0
      %849 = vmatprep.mubr.f32.mxu0 0.0
      %850 = vmatmul.mubr.f32.gmra.mrb[0].mxu0 %v690
      %v851 = vpop.f32.mrb[0].mxu0
      %v852 = vadd.f32 %v686, %v851
      %v853 = vpop.f32.mrb[0].mxu0
      %854 = vmatprep.mubr.f32.mxu0 0.0
      %855 = vmatmul.mubr.f32.gmra.mrb[0].mxu0 %v693
      %v856 = vpop.f32.mrb[0].mxu0
      %v857 = vadd.f32 %v686, %v856
      %v858 = vpop.f32.mrb[0].mxu0
      %859 = vmatprep.mubr.f32.mxu0 0.0
      %860 = vmatmul.mubr.f32.gmra.mrb[0].mxu0 %v696
      %v861 = vpop.f32.mrb[0].mxu0
      %v862 = vadd.f32 %v686, %v861
      %v863 = vpop.f32.mrb[0].mxu0
      %864 = vmatprep.mubr.f32.mxu0 0.0
      %865 = vmatmul.mubr.f32.gmra.mrb[0].mxu0 %v699
      %v866 = vpop.f32.mrb[0].mxu0
      %v867 = vadd.f32 %v686, %v866
      %v868 = vpop.f32.mrb[0].mxu0
      %869 = vmatprep.mubr.f32.mxu0 0.0
      %870 = vmatmul.mubr.f32.gmra.mrb[0].mxu0 %v702
      %v871 = vpop.f32.mrb[0].mxu0
      %v872 = vadd.f32 %v686, %v871
      %v873 = vpop.f32.mrb[0].mxu0
      %874 = vmatprep.mubr.f32.mxu0 0.0
      %875 = vmatmul.mubr.f32.gmra.mrb[0].mxu0 %v705
      %v876 = vpop.f32.mrb[0].mxu0
      %v877 = vadd.f32 %v686, %v876
      %v878 = vpop.f32.mrb[0].mxu0
      %879 = vmatprep.mubr.f32.mxu0 0.0
      %880 = vmatmul.mubr.f32.gmra.mrb[0].mxu0 %v708
      %v881 = vpop.f32.mrb[0].mxu0
      %v882 = vadd.f32 %v686, %v881
      %v883 = vpop.f32.mrb[0].mxu0
      %884 = vmatprep.mubr.f32.mxu0 0.0
      %885 = vmatmul.mubr.f32.gmra.mrb[0].mxu0 %v711
      %v886 = vpop.f32.mrb[0].mxu0
      %v887 = vadd.f32 %v686, %v886
      %v888 = vpop.f32.mrb[0].mxu0
      %889 = vmatprep.mubr.f32.mxu0 0.0
      %890 = vmatmul.mubr.f32.gmra.mrb[0].mxu0 %v714
      %v891 = vpop.f32.mrb[0].mxu0
      %v892 = vadd.f32 %v686, %v891
      %v893 = vpop.f32.mrb[0].mxu0
      %894 = vmatprep.mubr.f32.mxu0 0.0
      %895 = vmatmul.mubr.f32.gmra.mrb[0].mxu0 %v717
      %v896 = vpop.f32.mrb[0].mxu0
      %v897 = vadd.f32 %v686, %v896
      %v898 = vpop.f32.mrb[0].mxu0
      %899 = vmatprep.mubr.f32.mxu0 0.0
      %900 = vmatmul.mubr.f32.gmra.mrb[0].mxu0 %v720
      %v901 = vpop.f32.mrb[0].mxu0
      %v902 = vadd.f32 %v686, %v901
      %v903 = vpop.f32.mrb[0].mxu0
      %904 = vmatprep.mubr.f32.mxu0 0.0
      %905 = vmatmul.mubr.f32.gmra.mrb[0].mxu0 %v723
      %v906 = vpop.f32.mrb[0].mxu0
      %v907 = vadd.f32 %v686, %v906
      %v908 = vpop.f32.mrb[0].mxu0
      %909 = vmatprep.mubr.f32.mxu0 0.0
      %910 = vmatmul.mubr.f32.gmra.mrb[0].mxu0 %v726
      %v911 = vpop.f32.mrb[0].mxu0
      %v912 = vadd.f32 %v686, %v911
      %v913 = vpop.f32.mrb[0].mxu0
      %914 = vmatprep.mubr.f32.mxu0 0.0
      %915 = vmatmul.mubr.f32.gmra.mrb[0].mxu0 %v729
      %v916 = vpop.f32.mrb[0].mxu0
      %v917 = vadd.f32 %v686, %v916
      %v918 = vpop.f32.mrb[0].mxu0
      %919 = vmatprep.mubr.f32.mxu0 0.0
      %920 = vmatmul.mubr.f32.gmra.mrb[0].mxu0 %v732
      %v921 = vpop.f32.mrb[0].mxu0
      %v922 = vadd.f32 %v686, %v921
      %v923 = vpop.f32.mrb[0].mxu0
      %924 = vmatprep.mubr.f32.mxu0 0.0
      %925 = vmatmul.mubr.f32.gmra.mrb[0].mxu0 %v735
      %v926 = vpop.f32.mrb[0].mxu0
      %v927 = vadd.f32 %v686, %v926
      %v928 = vpop.f32.mrb[0].mxu0
      %929 = vmatprep.mubr.f32.mxu0 0.0
      %930 = vmatmul.mubr.f32.gmra.mrb[0].mxu0 %v738
      %v931 = vpop.f32.mrb[0].mxu0
      %v932 = vadd.f32 %v686, %v931
      %v933 = vpop.f32.mrb[0].mxu0
      %934 = vmatprep.mubr.f32.mxu0 0.0
      %935 = vmatmul.mubr.f32.gmra.mrb[0].mxu0 %v741
      %v936 = vpop.f32.mrb[0].mxu0
      %v937 = vadd.f32 %v686, %v936
      %v938 = vpop.f32.mrb[0].mxu0
      %939 = vmatprep.mubr.f32.mxu0 0.0
      %940 = vmatmul.mubr.f32.gmra.mrb[0].mxu0 %v744
      %v941 = vpop.f32.mrb[0].mxu0
      %v942 = vadd.f32 %v686, %v941
      %v943 = vpop.f32.mrb[0].mxu0
      %944 = vmatprep.mubr.f32.mxu0 0.0
      %945 = vmatmul.mubr.f32.gmra.mrb[0].mxu0 %v747
      %v946 = vpop.f32.mrb[0].mxu0
      %v947 = vadd.f32 %v686, %v946
      %v948 = vpop.f32.mrb[0].mxu0
      %949 = vmatprep.mubr.f32.mxu0 0.0
      %950 = vmatmul.mubr.f32.gmra.mrb[0].mxu0 %v750
      %v951 = vpop.f32.mrb[0].mxu0
      %v952 = vadd.f32 %v686, %v951
      %v953 = vpop.f32.mrb[0].mxu0
      %954 = vmatprep.mubr.f32.mxu0 0.0
      %955 = vmatmul.mubr.f32.gmra.mrb[0].mxu0 %v753
      %v956 = vpop.f32.mrb[0].mxu0
      %v957 = vadd.f32 %v686, %v956
      %v958 = vpop.f32.mrb[0].mxu0
      %959 = vmatprep.mubr.f32.mxu0 0.0
      %960 = vmatmul.mubr.f32.gmra.mrb[0].mxu0 %v756
      %v961 = vpop.f32.mrb[0].mxu0
      %v962 = vadd.f32 %v686, %v961
      %v963 = vpop.f32.mrb[0].mxu0
      %964 = vmatprep.mubr.f32.mxu0 0.0
      %965 = vmatmul.mubr.f32.gmra.mrb[0].mxu0 %v759
      %v966 = vpop.f32.mrb[0].mxu0
      %v967 = vadd.f32 %v686, %v966
      %v968 = vpop.f32.mrb[0].mxu0
      %969 = vmatprep.mubr.f32.mxu0 0.0
      %970 = vmatmul.mubr.f32.gmra.mrb[0].mxu0 %v762
      %v971 = vpop.f32.mrb[0].mxu0
      %v972 = vadd.f32 %v686, %v971
      %v973 = vpop.f32.mrb[0].mxu0
      %974 = vmatprep.mubr.f32.mxu0 0.0
      %975 = vmatmul.mubr.f32.gmra.mrb[0].mxu0 %v765
      %v976 = vpop.f32.mrb[0].mxu0
      %v977 = vadd.f32 %v686, %v976
      %v978 = vpop.f32.mrb[0].mxu0
      %979 = vmatprep.mubr.f32.mxu0 0.0
      %980 = vmatmul.mubr.f32.gmra.mrb[0].mxu0 %v768
      %v981 = vpop.f32.mrb[0].mxu0
      %v982 = vadd.f32 %v686, %v981
      %v983 = vpop.f32.mrb[0].mxu0
      %984 = vmatprep.mubr.f32.mxu0 0.0
      %985 = vmatmul.mubr.f32.gmra.mrb[0].mxu0 %v771
      %v986 = vpop.f32.mrb[0].mxu0
      %v987 = vadd.f32 %v686, %v986
      %v988 = vpop.f32.mrb[0].mxu0
      %989 = vmatprep.mubr.f32.mxu0 0.0
      %990 = vmatmul.mubr.f32.gmra.mrb[0].mxu0 %v774
      %v991 = vpop.f32.mrb[0].mxu0
      %v992 = vadd.f32 %v686, %v991
      %v993 = vpop.f32.mrb[0].mxu0
      %994 = vmatprep.mubr.f32.mxu0 0.0
      %995 = vmatmul.mubr.f32.gmra.mrb[0].mxu0 %v777
      %v996 = vpop.f32.mrb[0].mxu0
      %v997 = vadd.f32 %v686, %v996
      %v998 = vpop.f32.mrb[0].mxu0
      %999 = vmatprep.mubr.f32.mxu0 0.0
      %1000 = vmatmul.mubr.f32.gmra.mrb[0].mxu0 %v780
      %v1001 = vpop.f32.mrb[0].mxu0
      %v1002 = vadd.f32 %v686, %v1001
      %v1003 = vpop.f32.mrb[0].mxu0
      %1004 = vmatprep.mubr.f32.mxu0 0.0
      %1005 = vmatmul.mubr.f32.gmra.mrb[0].mxu0 %v783
      %v1006 = vpop.f32.mrb[0].mxu0
      %v1007 = vadd.f32 %v686, %v1006
      %v1008 = vpop.f32.mrb[0].mxu0
      %1009 = vdwg.mxu0
      %v1010 = vmax.f32 %v852, 0.0
      %v1011 = vmax.f32 %v857, 0.0
      %v1012 = vmax.f32 %v862, 0.0
      %v1013 = vmax.f32 %v867, 0.0
      %v1014 = vmax.f32 %v872, 0.0
      %v1015 = vmax.f32 %v877, 0.0
      %v1016 = vmax.f32 %v882, 0.0
      %v1017 = vmax.f32 %v887, 0.0
      %v1018 = vmax.f32 %v892, 0.0
      %v1019 = vmax.f32 %v897, 0.0
      %v1020 = vmax.f32 %v902, 0.0
      %v1021 = vmax.f32 %v907, 0.0
      %v1022 = vmax.f32 %v912, 0.0
      %v1023 = vmax.f32 %v917, 0.0
      %v1024 = vmax.f32 %v922, 0.0
      %v1025 = vmax.f32 %v927, 0.0
      %v1026 = vmax.f32 %v932, 0.0
      %v1027 = vmax.f32 %v937, 0.0
      %v1028 = vmax.f32 %v942, 0.0
      %v1029 = vmax.f32 %v947, 0.0
      %v1030 = vmax.f32 %v952, 0.0
      %v1031 = vmax.f32 %v957, 0.0
      %v1032 = vmax.f32 %v962, 0.0
      %v1033 = vmax.f32 %v967, 0.0
      %v1034 = vmax.f32 %v972, 0.0
      %v1035 = vmax.f32 %v977, 0.0
      %v1036 = vmax.f32 %v982, 0.0
      %v1037 = vmax.f32 %v987, 0.0
      %v1038 = vmax.f32 %v992, 0.0
      %v1039 = vmax.f32 %v997, 0.0
      %v1040 = vmax.f32 %v1002, 0.0
      %v1041 = vmax.f32 %v1007, 0.0
      %v1042 = vld [vmem:[%s5] sm:$0xff]
      %v1043 = vld [vmem:[%s5 + $0x8] sm:$0xff]
      %v1044 = vld [vmem:[%s5 + $0x10] sm:$0xff]
      %v1045 = vld [vmem:[%s6] sm:$0x1]
      %v1047 = vlaneseq
      %v1048 = vshrl.u32 %v1047, 7
      %v1049 = vsub.s32 0, %v1048
      %v1050 = vrot.slane %v1045, %v1049
      %vm1052 = vcmask 195584
      %v1054 = vsel %vm1052, %v1010, 0
      %v1057 = vsel %vm1052, %v1011, 0
      %v1060 = vsel %vm1052, %v1012, 0
      %v1063 = vsel %vm1052, %v1013, 0
      %v1066 = vsel %vm1052, %v1014, 0
      %v1069 = vsel %vm1052, %v1015, 0
      %v1072 = vsel %vm1052, %v1016, 0
      %v1075 = vsel %vm1052, %v1017, 0
      %v1078 = vsel %vm1052, %v1018, 0
      %v1081 = vsel %vm1052, %v1019, 0
      %v1084 = vsel %vm1052, %v1020, 0
      %v1087 = vsel %vm1052, %v1021, 0
      %v1090 = vsel %vm1052, %v1022, 0
      %v1093 = vsel %vm1052, %v1023, 0
      %v1096 = vsel %vm1052, %v1024, 0
      %v1099 = vsel %vm1052, %v1025, 0
      %v1102 = vsel %vm1052, %v1026, 0
      %v1105 = vsel %vm1052, %v1027, 0
      %v1108 = vsel %vm1052, %v1028, 0
      %v1111 = vsel %vm1052, %v1029, 0
      %v1114 = vsel %vm1052, %v1030, 0
      %v1117 = vsel %vm1052, %v1031, 0
      %v1120 = vsel %vm1052, %v1032, 0
      %v1123 = vsel %vm1052, %v1033, 0
      %v1126 = vsel %vm1052, %v1034, 0
      %v1129 = vsel %vm1052, %v1035, 0
      %v1132 = vsel %vm1052, %v1036, 0
      %v1135 = vsel %vm1052, %v1037, 0
      %v1138 = vsel %vm1052, %v1038, 0
      %v1141 = vsel %vm1052, %v1039, 0
      %v1144 = vsel %vm1052, %v1040, 0
      %v1147 = vsel %vm1052, %v1041, 0
      %1149 = vmatprep.subr.mxu0 0.0
      %1150 = vmatpush1.msra.mxu0 %v1042
      %1151 = vmatprep.subr.mxu0 0.0
      %1152 = vmatpush1.msra.mxu0 %v1043
      %1153 = vmatprep.subr.mxu0 0.0
      %1154 = vmatpush1.msra.mxu0 %v1044
      %1155 = vmatprep.subr.mxu0 0.0
      %1156 = vmatpush1.msra.mxu0 0.0
      %1157 = vmatprep.subr.mxu0 0.0
      %1158 = vmatpush1.msra.mxu0 0.0
      %1159 = vmatprep.subr.mxu0 0.0
      %1160 = vmatpush1.msra.mxu0 0.0
      %1161 = vmatprep.subr.mxu0 0.0
      %1162 = vmatpush1.msra.mxu0 0.0
      %1163 = vmatprep.subr.mxu0 0.0
      %1164 = vmatpush1.msra.mxu0 0.0
      %1165 = vmatprep.subr.mxu0 0.0
      %1166 = vmatpush1.msra.mxu0 0.0
      %1167 = vmatprep.subr.mxu0 0.0
      %1168 = vmatpush1.msra.mxu0 0.0
      %1169 = vmatprep.subr.mxu0 0.0
      %1170 = vmatpush1.msra.mxu0 0.0
      %1171 = vmatprep.subr.mxu0 0.0
      %1172 = vmatpush1.msra.mxu0 0.0
      %1173 = vmatprep.subr.mxu0 0.0
      %1174 = vmatpush1.msra.mxu0 0.0
      %1175 = vmatprep.subr.mxu0 0.0
      %1176 = vmatpush1.msra.mxu0 0.0
      %1177 = vmatprep.subr.mxu0 0.0
      %1178 = vmatpush1.msra.mxu0 0.0
      %1179 = vmatprep.subr.mxu0 0.0
      %1180 = vmatpush1.msra.mxu0 0.0
      %1181 = vmatprep.subr.mxu0 0.0
      %1182 = vmatpush1.msra.mxu0 0.0
      %1183 = vmatprep.subr.mxu0 0.0
      %1184 = vmatpush1.msra.mxu0 0.0
      %1185 = vmatprep.subr.mxu0 0.0
      %1186 = vmatpush1.msra.mxu0 0.0
      %1187 = vmatprep.subr.mxu0 0.0
      %1188 = vmatpush1.msra.mxu0 0.0
      %1189 = vmatprep.subr.mxu0 0.0
      %1190 = vmatpush1.msra.mxu0 0.0
      %1191 = vmatprep.subr.mxu0 0.0
      %1192 = vmatpush1.msra.mxu0 0.0
      %1193 = vmatprep.subr.mxu0 0.0
      %1194 = vmatpush1.msra.mxu0 0.0
      %1195 = vmatprep.subr.mxu0 0.0
      %1196 = vmatpush1.msra.mxu0 0.0
      %1197 = vmatprep.subr.mxu0 0.0
      %1198 = vmatpush1.msra.mxu0 0.0
      %1199 = vmatprep.subr.mxu0 0.0
      %1200 = vmatpush1.msra.mxu0 0.0
      %1201 = vmatprep.subr.mxu0 0.0
      %1202 = vmatpush1.msra.mxu0 0.0
      %1203 = vmatprep.subr.mxu0 0.0
      %1204 = vmatpush1.msra.mxu0 0.0
      %1205 = vmatprep.subr.mxu0 0.0
      %1206 = vmatpush1.msra.mxu0 0.0
      %1207 = vmatprep.subr.mxu0 0.0
      %1208 = vmatpush1.msra.mxu0 0.0
      %1209 = vmatprep.subr.mxu0 0.0
      %1210 = vmatpush1.msra.mxu0 0.0
      %1211 = vmatprep.subr.mxu0 0.0
      %1212 = vmatpush1.msra.mxu0 0.0
      %1213 = vmatprep.mubr.f32.mxu0 0.0
      %1214 = vmatmul.mubr.f32.gmra.mrb[0].mxu0 %v1054
      %v1215 = vpop.f32.mrb[0].mxu0
      %v1216 = vadd.f32 %v1050, %v1215
      %v1217 = vpop.f32.mrb[0].mxu0
      %1218 = vmatprep.mubr.f32.mxu0 0.0
      %1219 = vmatmul.mubr.f32.gmra.mrb[0].mxu0 %v1057
      %v1220 = vpop.f32.mrb[0].mxu0
      %v1221 = vadd.f32 %v1050, %v1220
      %v1222 = vpop.f32.mrb[0].mxu0
      %1223 = vmatprep.mubr.f32.mxu0 0.0
      %1224 = vmatmul.mubr.f32.gmra.mrb[0].mxu0 %v1060
      %v1225 = vpop.f32.mrb[0].mxu0
      %v1226 = vadd.f32 %v1050, %v1225
      %v1227 = vpop.f32.mrb[0].mxu0
      %1228 = vmatprep.mubr.f32.mxu0 0.0
      %1229 = vmatmul.mubr.f32.gmra.mrb[0].mxu0 %v1063
      %v1230 = vpop.f32.mrb[0].mxu0
      %v1231 = vadd.f32 %v1050, %v1230
      %v1232 = vpop.f32.mrb[0].mxu0
      %1233 = vmatprep.mubr.f32.mxu0 0.0
      %1234 = vmatmul.mubr.f32.gmra.mrb[0].mxu0 %v1066
      %v1235 = vpop.f32.mrb[0].mxu0
      %v1236 = vadd.f32 %v1050, %v1235
      %v1237 = vpop.f32.mrb[0].mxu0
      %1238 = vmatprep.mubr.f32.mxu0 0.0
      %1239 = vmatmul.mubr.f32.gmra.mrb[0].mxu0 %v1069
      %v1240 = vpop.f32.mrb[0].mxu0
      %v1241 = vadd.f32 %v1050, %v1240
      %v1242 = vpop.f32.mrb[0].mxu0
      %1243 = vmatprep.mubr.f32.mxu0 0.0
      %1244 = vmatmul.mubr.f32.gmra.mrb[0].mxu0 %v1072
      %v1245 = vpop.f32.mrb[0].mxu0
      %v1246 = vadd.f32 %v1050, %v1245
      %v1247 = vpop.f32.mrb[0].mxu0
      %1248 = vmatprep.mubr.f32.mxu0 0.0
      %1249 = vmatmul.mubr.f32.gmra.mrb[0].mxu0 %v1075
      %v1250 = vpop.f32.mrb[0].mxu0
      %v1251 = vadd.f32 %v1050, %v1250
      %v1252 = vpop.f32.mrb[0].mxu0
      %1253 = vmatprep.mubr.f32.mxu0 0.0
      %1254 = vmatmul.mubr.f32.gmra.mrb[0].mxu0 %v1078
      %v1255 = vpop.f32.mrb[0].mxu0
      %v1256 = vadd.f32 %v1050, %v1255
      %v1257 = vpop.f32.mrb[0].mxu0
      %1258 = vmatprep.mubr.f32.mxu0 0.0
      %1259 = vmatmul.mubr.f32.gmra.mrb[0].mxu0 %v1081
      %v1260 = vpop.f32.mrb[0].mxu0
      %v1261 = vadd.f32 %v1050, %v1260
      %v1262 = vpop.f32.mrb[0].mxu0
      %1263 = vmatprep.mubr.f32.mxu0 0.0
      %1264 = vmatmul.mubr.f32.gmra.mrb[0].mxu0 %v1084
      %v1265 = vpop.f32.mrb[0].mxu0
      %v1266 = vadd.f32 %v1050, %v1265
      %v1267 = vpop.f32.mrb[0].mxu0
      %1268 = vmatprep.mubr.f32.mxu0 0.0
      %1269 = vmatmul.mubr.f32.gmra.mrb[0].mxu0 %v1087
      %v1270 = vpop.f32.mrb[0].mxu0
      %v1271 = vadd.f32 %v1050, %v1270
      %v1272 = vpop.f32.mrb[0].mxu0
      %1273 = vmatprep.mubr.f32.mxu0 0.0
      %1274 = vmatmul.mubr.f32.gmra.mrb[0].mxu0 %v1090
      %v1275 = vpop.f32.mrb[0].mxu0
      %v1276 = vadd.f32 %v1050, %v1275
      %v1277 = vpop.f32.mrb[0].mxu0
      %1278 = vmatprep.mubr.f32.mxu0 0.0
      %1279 = vmatmul.mubr.f32.gmra.mrb[0].mxu0 %v1093
      %v1280 = vpop.f32.mrb[0].mxu0
      %v1281 = vadd.f32 %v1050, %v1280
      %v1282 = vpop.f32.mrb[0].mxu0
      %1283 = vmatprep.mubr.f32.mxu0 0.0
      %1284 = vmatmul.mubr.f32.gmra.mrb[0].mxu0 %v1096
      %v1285 = vpop.f32.mrb[0].mxu0
      %v1286 = vadd.f32 %v1050, %v1285
      %v1287 = vpop.f32.mrb[0].mxu0
      %1288 = vmatprep.mubr.f32.mxu0 0.0
      %1289 = vmatmul.mubr.f32.gmra.mrb[0].mxu0 %v1099
      %v1290 = vpop.f32.mrb[0].mxu0
      %v1291 = vadd.f32 %v1050, %v1290
      %v1292 = vpop.f32.mrb[0].mxu0
      %1293 = vmatprep.mubr.f32.mxu0 0.0
      %1294 = vmatmul.mubr.f32.gmra.mrb[0].mxu0 %v1102
      %v1295 = vpop.f32.mrb[0].mxu0
      %v1296 = vadd.f32 %v1050, %v1295
      %v1297 = vpop.f32.mrb[0].mxu0
      %1298 = vmatprep.mubr.f32.mxu0 0.0
      %1299 = vmatmul.mubr.f32.gmra.mrb[0].mxu0 %v1105
      %v1300 = vpop.f32.mrb[0].mxu0
      %v1301 = vadd.f32 %v1050, %v1300
      %v1302 = vpop.f32.mrb[0].mxu0
      %1303 = vmatprep.mubr.f32.mxu0 0.0
      %1304 = vmatmul.mubr.f32.gmra.mrb[0].mxu0 %v1108
      %v1305 = vpop.f32.mrb[0].mxu0
      %v1306 = vadd.f32 %v1050, %v1305
      %v1307 = vpop.f32.mrb[0].mxu0
      %1308 = vmatprep.mubr.f32.mxu0 0.0
      %1309 = vmatmul.mubr.f32.gmra.mrb[0].mxu0 %v1111
      %v1310 = vpop.f32.mrb[0].mxu0
      %v1311 = vadd.f32 %v1050, %v1310
      %v1312 = vpop.f32.mrb[0].mxu0
      %1313 = vmatprep.mubr.f32.mxu0 0.0
      %1314 = vmatmul.mubr.f32.gmra.mrb[0].mxu0 %v1114
      %v1315 = vpop.f32.mrb[0].mxu0
      %v1316 = vadd.f32 %v1050, %v1315
      %v1317 = vpop.f32.mrb[0].mxu0
      %1318 = vmatprep.mubr.f32.mxu0 0.0
      %1319 = vmatmul.mubr.f32.gmra.mrb[0].mxu0 %v1117
      %v1320 = vpop.f32.mrb[0].mxu0
      %v1321 = vadd.f32 %v1050, %v1320
      %v1322 = vpop.f32.mrb[0].mxu0
      %1323 = vmatprep.mubr.f32.mxu0 0.0
      %1324 = vmatmul.mubr.f32.gmra.mrb[0].mxu0 %v1120
      %v1325 = vpop.f32.mrb[0].mxu0
      %v1326 = vadd.f32 %v1050, %v1325
      %v1327 = vpop.f32.mrb[0].mxu0
      %1328 = vmatprep.mubr.f32.mxu0 0.0
      %1329 = vmatmul.mubr.f32.gmra.mrb[0].mxu0 %v1123
      %v1330 = vpop.f32.mrb[0].mxu0
      %v1331 = vadd.f32 %v1050, %v1330
      %v1332 = vpop.f32.mrb[0].mxu0
      %1333 = vmatprep.mubr.f32.mxu0 0.0
      %1334 = vmatmul.mubr.f32.gmra.mrb[0].mxu0 %v1126
      %v1335 = vpop.f32.mrb[0].mxu0
      %v1336 = vadd.f32 %v1050, %v1335
      %v1337 = vpop.f32.mrb[0].mxu0
      %1338 = vmatprep.mubr.f32.mxu0 0.0
      %1339 = vmatmul.mubr.f32.gmra.mrb[0].mxu0 %v1129
      %v1340 = vpop.f32.mrb[0].mxu0
      %v1341 = vadd.f32 %v1050, %v1340
      %v1342 = vpop.f32.mrb[0].mxu0
      %1343 = vmatprep.mubr.f32.mxu0 0.0
      %1344 = vmatmul.mubr.f32.gmra.mrb[0].mxu0 %v1132
      %v1345 = vpop.f32.mrb[0].mxu0
      %v1346 = vadd.f32 %v1050, %v1345
      %v1347 = vpop.f32.mrb[0].mxu0
      %1348 = vmatprep.mubr.f32.mxu0 0.0
      %1349 = vmatmul.mubr.f32.gmra.mrb[0].mxu0 %v1135
      %v1350 = vpop.f32.mrb[0].mxu0
      %v1351 = vadd.f32 %v1050, %v1350
      %v1352 = vpop.f32.mrb[0].mxu0
      %1353 = vmatprep.mubr.f32.mxu0 0.0
      %1354 = vmatmul.mubr.f32.gmra.mrb[0].mxu0 %v1138
      %v1355 = vpop.f32.mrb[0].mxu0
      %v1356 = vadd.f32 %v1050, %v1355
      %v1357 = vpop.f32.mrb[0].mxu0
      %1358 = vmatprep.mubr.f32.mxu0 0.0
      %1359 = vmatmul.mubr.f32.gmra.mrb[0].mxu0 %v1141
      %v1360 = vpop.f32.mrb[0].mxu0
      %v1361 = vadd.f32 %v1050, %v1360
      %v1362 = vpop.f32.mrb[0].mxu0
      %1363 = vmatprep.mubr.f32.mxu0 0.0
      %1364 = vmatmul.mubr.f32.gmra.mrb[0].mxu0 %v1144
      %v1365 = vpop.f32.mrb[0].mxu0
      %v1366 = vadd.f32 %v1050, %v1365
      %v1367 = vpop.f32.mrb[0].mxu0
      %1368 = vmatprep.mubr.f32.mxu0 0.0
      %1369 = vmatmul.mubr.f32.gmra.mrb[0].mxu0 %v1147
      %v1370 = vpop.f32.mrb[0].mxu0
      %v1371 = vadd.f32 %v1050, %v1370
      %v1372 = vpop.f32.mrb[0].mxu0
      %1373 = vdwg.mxu0
      %v1374 = vrot.slane %v1216, 4
      %v1375 = vmax.f32 %v1216, %v1374
      %v1376 = vrot.slane %v1375, 2
      %v1377 = vmax.f32 %v1375, %v1376
      %v1378 = vrot.slane %v1377, 1
      %v1379 = vmax.f32 %v1377, %v1378
      %v1380 = vrot.slane %v1221, 4
      %v1381 = vmax.f32 %v1221, %v1380
      %v1382 = vrot.slane %v1381, 2
      %v1383 = vmax.f32 %v1381, %v1382
      %v1384 = vrot.slane %v1383, 1
      %v1385 = vmax.f32 %v1383, %v1384
      %v1386 = vrot.slane %v1226, 4
      %v1387 = vmax.f32 %v1226, %v1386
      %v1388 = vrot.slane %v1387, 2
      %v1389 = vmax.f32 %v1387, %v1388
      %v1390 = vrot.slane %v1389, 1
      %v1391 = vmax.f32 %v1389, %v1390
      %v1392 = vrot.slane %v1231, 4
      %v1393 = vmax.f32 %v1231, %v1392
      %v1394 = vrot.slane %v1393, 2
      %v1395 = vmax.f32 %v1393, %v1394
      %v1396 = vrot.slane %v1395, 1
      %v1397 = vmax.f32 %v1395, %v1396
      %v1398 = vrot.slane %v1236, 4
      %v1399 = vmax.f32 %v1236, %v1398
      %v1400 = vrot.slane %v1399, 2
      %v1401 = vmax.f32 %v1399, %v1400
      %v1402 = vrot.slane %v1401, 1
      %v1403 = vmax.f32 %v1401, %v1402
      %v1404 = vrot.slane %v1241, 4
      %v1405 = vmax.f32 %v1241, %v1404
      %v1406 = vrot.slane %v1405, 2
      %v1407 = vmax.f32 %v1405, %v1406
      %v1408 = vrot.slane %v1407, 1
      %v1409 = vmax.f32 %v1407, %v1408
      %v1410 = vrot.slane %v1246, 4
      %v1411 = vmax.f32 %v1246, %v1410
      %v1412 = vrot.slane %v1411, 2
      %v1413 = vmax.f32 %v1411, %v1412
      %v1414 = vrot.slane %v1413, 1
      %v1415 = vmax.f32 %v1413, %v1414
      %v1416 = vrot.slane %v1251, 4
      %v1417 = vmax.f32 %v1251, %v1416
      %v1418 = vrot.slane %v1417, 2
      %v1419 = vmax.f32 %v1417, %v1418
      %v1420 = vrot.slane %v1419, 1
      %v1421 = vmax.f32 %v1419, %v1420
      %v1422 = vrot.slane %v1256, 4
      %v1423 = vmax.f32 %v1256, %v1422
      %v1424 = vrot.slane %v1423, 2
      %v1425 = vmax.f32 %v1423, %v1424
      %v1426 = vrot.slane %v1425, 1
      %v1427 = vmax.f32 %v1425, %v1426
      %v1428 = vrot.slane %v1261, 4
      %v1429 = vmax.f32 %v1261, %v1428
      %v1430 = vrot.slane %v1429, 2
      %v1431 = vmax.f32 %v1429, %v1430
      %v1432 = vrot.slane %v1431, 1
      %v1433 = vmax.f32 %v1431, %v1432
      %v1434 = vrot.slane %v1266, 4
      %v1435 = vmax.f32 %v1266, %v1434
      %v1436 = vrot.slane %v1435, 2
      %v1437 = vmax.f32 %v1435, %v1436
      %v1438 = vrot.slane %v1437, 1
      %v1439 = vmax.f32 %v1437, %v1438
      %v1440 = vrot.slane %v1271, 4
      %v1441 = vmax.f32 %v1271, %v1440
      %v1442 = vrot.slane %v1441, 2
      %v1443 = vmax.f32 %v1441, %v1442
      %v1444 = vrot.slane %v1443, 1
      %v1445 = vmax.f32 %v1443, %v1444
      %v1446 = vrot.slane %v1276, 4
      %v1447 = vmax.f32 %v1276, %v1446
      %v1448 = vrot.slane %v1447, 2
      %v1449 = vmax.f32 %v1447, %v1448
      %v1450 = vrot.slane %v1449, 1
      %v1451 = vmax.f32 %v1449, %v1450
      %v1452 = vrot.slane %v1281, 4
      %v1453 = vmax.f32 %v1281, %v1452
      %v1454 = vrot.slane %v1453, 2
      %v1455 = vmax.f32 %v1453, %v1454
      %v1456 = vrot.slane %v1455, 1
      %v1457 = vmax.f32 %v1455, %v1456
      %v1458 = vrot.slane %v1286, 4
      %v1459 = vmax.f32 %v1286, %v1458
      %v1460 = vrot.slane %v1459, 2
      %v1461 = vmax.f32 %v1459, %v1460
      %v1462 = vrot.slane %v1461, 1
      %v1463 = vmax.f32 %v1461, %v1462
      %v1464 = vrot.slane %v1291, 4
      %v1465 = vmax.f32 %v1291, %v1464
      %v1466 = vrot.slane %v1465, 2
      %v1467 = vmax.f32 %v1465, %v1466
      %v1468 = vrot.slane %v1467, 1
      %v1469 = vmax.f32 %v1467, %v1468
      %v1470 = vrot.slane %v1296, 4
      %v1471 = vmax.f32 %v1296, %v1470
      %v1472 = vrot.slane %v1471, 2
      %v1473 = vmax.f32 %v1471, %v1472
      %v1474 = vrot.slane %v1473, 1
      %v1475 = vmax.f32 %v1473, %v1474
      %v1476 = vrot.slane %v1301, 4
      %v1477 = vmax.f32 %v1301, %v1476
      %v1478 = vrot.slane %v1477, 2
      %v1479 = vmax.f32 %v1477, %v1478
      %v1480 = vrot.slane %v1479, 1
      %v1481 = vmax.f32 %v1479, %v1480
      %v1482 = vrot.slane %v1306, 4
      %v1483 = vmax.f32 %v1306, %v1482
      %v1484 = vrot.slane %v1483, 2
      %v1485 = vmax.f32 %v1483, %v1484
      %v1486 = vrot.slane %v1485, 1
      %v1487 = vmax.f32 %v1485, %v1486
      %v1488 = vrot.slane %v1311, 4
      %v1489 = vmax.f32 %v1311, %v1488
      %v1490 = vrot.slane %v1489, 2
      %v1491 = vmax.f32 %v1489, %v1490
      %v1492 = vrot.slane %v1491, 1
      %v1493 = vmax.f32 %v1491, %v1492
      %v1494 = vrot.slane %v1316, 4
      %v1495 = vmax.f32 %v1316, %v1494
      %v1496 = vrot.slane %v1495, 2
      %v1497 = vmax.f32 %v1495, %v1496
      %v1498 = vrot.slane %v1497, 1
      %v1499 = vmax.f32 %v1497, %v1498
      %v1500 = vrot.slane %v1321, 4
      %v1501 = vmax.f32 %v1321, %v1500
      %v1502 = vrot.slane %v1501, 2
      %v1503 = vmax.f32 %v1501, %v1502
      %v1504 = vrot.slane %v1503, 1
      %v1505 = vmax.f32 %v1503, %v1504
      %v1506 = vrot.slane %v1326, 4
      %v1507 = vmax.f32 %v1326, %v1506
      %v1508 = vrot.slane %v1507, 2
      %v1509 = vmax.f32 %v1507, %v1508
      %v1510 = vrot.slane %v1509, 1
      %v1511 = vmax.f32 %v1509, %v1510
      %v1512 = vrot.slane %v1331, 4
      %v1513 = vmax.f32 %v1331, %v1512
      %v1514 = vrot.slane %v1513, 2
      %v1515 = vmax.f32 %v1513, %v1514
      %v1516 = vrot.slane %v1515, 1
      %v1517 = vmax.f32 %v1515, %v1516
      %v1518 = vrot.slane %v1336, 4
      %v1519 = vmax.f32 %v1336, %v1518
      %v1520 = vrot.slane %v1519, 2
      %v1521 = vmax.f32 %v1519, %v1520
      %v1522 = vrot.slane %v1521, 1
      %v1523 = vmax.f32 %v1521, %v1522
      %v1524 = vrot.slane %v1341, 4
      %v1525 = vmax.f32 %v1341, %v1524
      %v1526 = vrot.slane %v1525, 2
      %v1527 = vmax.f32 %v1525, %v1526
      %v1528 = vrot.slane %v1527, 1
      %v1529 = vmax.f32 %v1527, %v1528
      %v1530 = vrot.slane %v1346, 4
      %v1531 = vmax.f32 %v1346, %v1530
      %v1532 = vrot.slane %v1531, 2
      %v1533 = vmax.f32 %v1531, %v1532
      %v1534 = vrot.slane %v1533, 1
      %v1535 = vmax.f32 %v1533, %v1534
      %v1536 = vrot.slane %v1351, 4
      %v1537 = vmax.f32 %v1351, %v1536
      %v1538 = vrot.slane %v1537, 2
      %v1539 = vmax.f32 %v1537, %v1538
      %v1540 = vrot.slane %v1539, 1
      %v1541 = vmax.f32 %v1539, %v1540
      %v1542 = vrot.slane %v1356, 4
      %v1543 = vmax.f32 %v1356, %v1542
      %v1544 = vrot.slane %v1543, 2
      %v1545 = vmax.f32 %v1543, %v1544
      %v1546 = vrot.slane %v1545, 1
      %v1547 = vmax.f32 %v1545, %v1546
      %v1548 = vrot.slane %v1361, 4
      %v1549 = vmax.f32 %v1361, %v1548
      %v1550 = vrot.slane %v1549, 2
      %v1551 = vmax.f32 %v1549, %v1550
      %v1552 = vrot.slane %v1551, 1
      %v1553 = vmax.f32 %v1551, %v1552
      %v1554 = vrot.slane %v1366, 4
      %v1555 = vmax.f32 %v1366, %v1554
      %v1556 = vrot.slane %v1555, 2
      %v1557 = vmax.f32 %v1555, %v1556
      %v1558 = vrot.slane %v1557, 1
      %v1559 = vmax.f32 %v1557, %v1558
      %v1560 = vrot.slane %v1371, 4
      %v1561 = vmax.f32 %v1371, %v1560
      %v1562 = vrot.slane %v1561, 2
      %v1563 = vmax.f32 %v1561, %v1562
      %v1564 = vrot.slane %v1563, 1
      %v1565 = vmax.f32 %v1563, %v1564
      %v1566 = vsub.f32 %v1216, %v1379
      %v1567 = vsub.f32 %v1221, %v1385
      %v1568 = vsub.f32 %v1226, %v1391
      %v1569 = vsub.f32 %v1231, %v1397
      %v1570 = vsub.f32 %v1236, %v1403
      %v1571 = vsub.f32 %v1241, %v1409
      %v1572 = vsub.f32 %v1246, %v1415
      %v1573 = vsub.f32 %v1251, %v1421
      %v1574 = vsub.f32 %v1256, %v1427
      %v1575 = vsub.f32 %v1261, %v1433
      %v1576 = vsub.f32 %v1266, %v1439
      %v1577 = vsub.f32 %v1271, %v1445
      %v1578 = vsub.f32 %v1276, %v1451
      %v1579 = vsub.f32 %v1281, %v1457
      %v1580 = vsub.f32 %v1286, %v1463
      %v1581 = vsub.f32 %v1291, %v1469
      %v1582 = vsub.f32 %v1296, %v1475
      %v1583 = vsub.f32 %v1301, %v1481
      %v1584 = vsub.f32 %v1306, %v1487
      %v1585 = vsub.f32 %v1311, %v1493
      %v1586 = vsub.f32 %v1316, %v1499
      %v1587 = vsub.f32 %v1321, %v1505
      %v1588 = vsub.f32 %v1326, %v1511
      %v1589 = vsub.f32 %v1331, %v1517
      %v1590 = vsub.f32 %v1336, %v1523
      %v1591 = vsub.f32 %v1341, %v1529
      %v1592 = vsub.f32 %v1346, %v1535
      %v1593 = vsub.f32 %v1351, %v1541
      %v1594 = vsub.f32 %v1356, %v1547
      %v1595 = vsub.f32 %v1361, %v1553
      %v1596 = vsub.f32 %v1366, %v1559
      %v1597 = vsub.f32 %v1371, %v1565
      %v1598 = vmul.f32 %v1566, 1.442695
      %v1599 = vpow.pop %v1598
      %v1600 = vmul.f32 %v1567, 1.442695
      %v1601 = vpow.pop %v1600
      %v1602 = vmul.f32 %v1568, 1.442695
      %v1603 = vpow.pop %v1602
      %v1604 = vmul.f32 %v1569, 1.442695
      %v1605 = vpow.pop %v1604
      %v1606 = vmul.f32 %v1570, 1.442695
      %v1607 = vpow.pop %v1606
      %v1608 = vmul.f32 %v1571, 1.442695
      %v1609 = vpow.pop %v1608
      %v1610 = vmul.f32 %v1572, 1.442695
      %v1611 = vpow.pop %v1610
      %v1612 = vmul.f32 %v1573, 1.442695
      %v1613 = vpow.pop %v1612
      %v1614 = vmul.f32 %v1574, 1.442695
      %v1615 = vpow.pop %v1614
      %v1616 = vmul.f32 %v1575, 1.442695
      %v1617 = vpow.pop %v1616
      %v1618 = vmul.f32 %v1576, 1.442695
      %v1619 = vpow.pop %v1618
      %v1620 = vmul.f32 %v1577, 1.442695
      %v1621 = vpow.pop %v1620
      %v1622 = vmul.f32 %v1578, 1.442695
      %v1623 = vpow.pop %v1622
      %v1624 = vmul.f32 %v1579, 1.442695
      %v1625 = vpow.pop %v1624
      %v1626 = vmul.f32 %v1580, 1.442695
      %v1627 = vpow.pop %v1626
      %v1628 = vmul.f32 %v1581, 1.442695
      %v1629 = vpow.pop %v1628
      %v1630 = vmul.f32 %v1582, 1.442695
      %v1631 = vpow.pop %v1630
      %v1632 = vmul.f32 %v1583, 1.442695
      %v1633 = vpow.pop %v1632
      %v1634 = vmul.f32 %v1584, 1.442695
      %v1635 = vpow.pop %v1634
      %v1636 = vmul.f32 %v1585, 1.442695
      %v1637 = vpow.pop %v1636
      %v1638 = vmul.f32 %v1586, 1.442695
      %v1639 = vpow.pop %v1638
      %v1640 = vmul.f32 %v1587, 1.442695
      %v1641 = vpow.pop %v1640
      %v1642 = vmul.f32 %v1588, 1.442695
      %v1643 = vpow.pop %v1642
      %v1644 = vmul.f32 %v1589, 1.442695
      %v1645 = vpow.pop %v1644
      %v1646 = vmul.f32 %v1590, 1.442695
      %v1647 = vpow.pop %v1646
      %v1648 = vmul.f32 %v1591, 1.442695
      %v1649 = vpow.pop %v1648
      %v1650 = vmul.f32 %v1592, 1.442695
      %v1651 = vpow.pop %v1650
      %v1652 = vmul.f32 %v1593, 1.442695
      %v1653 = vpow.pop %v1652
      %v1654 = vmul.f32 %v1594, 1.442695
      %v1655 = vpow.pop %v1654
      %v1656 = vmul.f32 %v1595, 1.442695
      %v1657 = vpow.pop %v1656
      %v1658 = vmul.f32 %v1596, 1.442695
      %v1659 = vpow.pop %v1658
      %v1660 = vmul.f32 %v1597, 1.442695
      %v1661 = vpow.pop %v1660
      %v1662 = vrot.slane %v1599, 4
      %v1663 = vadd.f32 %v1599, %v1662
      %v1664 = vrot.slane %v1663, 2
      %v1665 = vadd.f32 %v1663, %v1664
      %v1666 = vrot.slane %v1665, 1
      %v1667 = vadd.f32 %v1665, %v1666
      %v1668 = vrot.slane %v1601, 4
      %v1669 = vadd.f32 %v1601, %v1668
      %v1670 = vrot.slane %v1669, 2
      %v1671 = vadd.f32 %v1669, %v1670
      %v1672 = vrot.slane %v1671, 1
      %v1673 = vadd.f32 %v1671, %v1672
      %v1674 = vrot.slane %v1603, 4
      %v1675 = vadd.f32 %v1603, %v1674
      %v1676 = vrot.slane %v1675, 2
      %v1677 = vadd.f32 %v1675, %v1676
      %v1678 = vrot.slane %v1677, 1
      %v1679 = vadd.f32 %v1677, %v1678
      %v1680 = vrot.slane %v1605, 4
      %v1681 = vadd.f32 %v1605, %v1680
      %v1682 = vrot.slane %v1681, 2
      %v1683 = vadd.f32 %v1681, %v1682
      %v1684 = vrot.slane %v1683, 1
      %v1685 = vadd.f32 %v1683, %v1684
      %v1686 = vrot.slane %v1607, 4
      %v1687 = vadd.f32 %v1607, %v1686
      %v1688 = vrot.slane %v1687, 2
      %v1689 = vadd.f32 %v1687, %v1688
      %v1690 = vrot.slane %v1689, 1
      %v1691 = vadd.f32 %v1689, %v1690
      %v1692 = vrot.slane %v1609, 4
      %v1693 = vadd.f32 %v1609, %v1692
      %v1694 = vrot.slane %v1693, 2
      %v1695 = vadd.f32 %v1693, %v1694
      %v1696 = vrot.slane %v1695, 1
      %v1697 = vadd.f32 %v1695, %v1696
      %v1698 = vrot.slane %v1611, 4
      %v1699 = vadd.f32 %v1611, %v1698
      %v1700 = vrot.slane %v1699, 2
      %v1701 = vadd.f32 %v1699, %v1700
      %v1702 = vrot.slane %v1701, 1
      %v1703 = vadd.f32 %v1701, %v1702
      %v1704 = vrot.slane %v1613, 4
      %v1705 = vadd.f32 %v1613, %v1704
      %v1706 = vrot.slane %v1705, 2
      %v1707 = vadd.f32 %v1705, %v1706
      %v1708 = vrot.slane %v1707, 1
      %v1709 = vadd.f32 %v1707, %v1708
      %v1710 = vrot.slane %v1615, 4
      %v1711 = vadd.f32 %v1615, %v1710
      %v1712 = vrot.slane %v1711, 2
      %v1713 = vadd.f32 %v1711, %v1712
      %v1714 = vrot.slane %v1713, 1
      %v1715 = vadd.f32 %v1713, %v1714
      %v1716 = vrot.slane %v1617, 4
      %v1717 = vadd.f32 %v1617, %v1716
      %v1718 = vrot.slane %v1717, 2
      %v1719 = vadd.f32 %v1717, %v1718
      %v1720 = vrot.slane %v1719, 1
      %v1721 = vadd.f32 %v1719, %v1720
      %v1722 = vrot.slane %v1619, 4
      %v1723 = vadd.f32 %v1619, %v1722
      %v1724 = vrot.slane %v1723, 2
      %v1725 = vadd.f32 %v1723, %v1724
      %v1726 = vrot.slane %v1725, 1
      %v1727 = vadd.f32 %v1725, %v1726
      %v1728 = vrot.slane %v1621, 4
      %v1729 = vadd.f32 %v1621, %v1728
      %v1730 = vrot.slane %v1729, 2
      %v1731 = vadd.f32 %v1729, %v1730
      %v1732 = vrot.slane %v1731, 1
      %v1733 = vadd.f32 %v1731, %v1732
      %v1734 = vrot.slane %v1623, 4
      %v1735 = vadd.f32 %v1623, %v1734
      %v1736 = vrot.slane %v1735, 2
      %v1737 = vadd.f32 %v1735, %v1736
      %v1738 = vrot.slane %v1737, 1
      %v1739 = vadd.f32 %v1737, %v1738
      %v1740 = vrot.slane %v1625, 4
      %v1741 = vadd.f32 %v1625, %v1740
      %v1742 = vrot.slane %v1741, 2
      %v1743 = vadd.f32 %v1741, %v1742
      %v1744 = vrot.slane %v1743, 1
      %v1745 = vadd.f32 %v1743, %v1744
      %v1746 = vrot.slane %v1627, 4
      %v1747 = vadd.f32 %v1627, %v1746
      %v1748 = vrot.slane %v1747, 2
      %v1749 = vadd.f32 %v1747, %v1748
      %v1750 = vrot.slane %v1749, 1
      %v1751 = vadd.f32 %v1749, %v1750
      %v1752 = vrot.slane %v1629, 4
      %v1753 = vadd.f32 %v1629, %v1752
      %v1754 = vrot.slane %v1753, 2
      %v1755 = vadd.f32 %v1753, %v1754
      %v1756 = vrot.slane %v1755, 1
      %v1757 = vadd.f32 %v1755, %v1756
      %v1758 = vrot.slane %v1631, 4
      %v1759 = vadd.f32 %v1631, %v1758
      %v1760 = vrot.slane %v1759, 2
      %v1761 = vadd.f32 %v1759, %v1760
      %v1762 = vrot.slane %v1761, 1
      %v1763 = vadd.f32 %v1761, %v1762
      %v1764 = vrot.slane %v1633, 4
      %v1765 = vadd.f32 %v1633, %v1764
      %v1766 = vrot.slane %v1765, 2
      %v1767 = vadd.f32 %v1765, %v1766
      %v1768 = vrot.slane %v1767, 1
      %v1769 = vadd.f32 %v1767, %v1768
      %v1770 = vrot.slane %v1635, 4
      %v1771 = vadd.f32 %v1635, %v1770
      %v1772 = vrot.slane %v1771, 2
      %v1773 = vadd.f32 %v1771, %v1772
      %v1774 = vrot.slane %v1773, 1
      %v1775 = vadd.f32 %v1773, %v1774
      %v1776 = vrot.slane %v1637, 4
      %v1777 = vadd.f32 %v1637, %v1776
      %v1778 = vrot.slane %v1777, 2
      %v1779 = vadd.f32 %v1777, %v1778
      %v1780 = vrot.slane %v1779, 1
      %v1781 = vadd.f32 %v1779, %v1780
      %v1782 = vrot.slane %v1639, 4
      %v1783 = vadd.f32 %v1639, %v1782
      %v1784 = vrot.slane %v1783, 2
      %v1785 = vadd.f32 %v1783, %v1784
      %v1786 = vrot.slane %v1785, 1
      %v1787 = vadd.f32 %v1785, %v1786
      %v1788 = vrot.slane %v1641, 4
      %v1789 = vadd.f32 %v1641, %v1788
      %v1790 = vrot.slane %v1789, 2
      %v1791 = vadd.f32 %v1789, %v1790
      %v1792 = vrot.slane %v1791, 1
      %v1793 = vadd.f32 %v1791, %v1792
      %v1794 = vrot.slane %v1643, 4
      %v1795 = vadd.f32 %v1643, %v1794
      %v1796 = vrot.slane %v1795, 2
      %v1797 = vadd.f32 %v1795, %v1796
      %v1798 = vrot.slane %v1797, 1
      %v1799 = vadd.f32 %v1797, %v1798
      %v1800 = vrot.slane %v1645, 4
      %v1801 = vadd.f32 %v1645, %v1800
      %v1802 = vrot.slane %v1801, 2
      %v1803 = vadd.f32 %v1801, %v1802
      %v1804 = vrot.slane %v1803, 1
      %v1805 = vadd.f32 %v1803, %v1804
      %v1806 = vrot.slane %v1647, 4
      %v1807 = vadd.f32 %v1647, %v1806
      %v1808 = vrot.slane %v1807, 2
      %v1809 = vadd.f32 %v1807, %v1808
      %v1810 = vrot.slane %v1809, 1
      %v1811 = vadd.f32 %v1809, %v1810
      %v1812 = vrot.slane %v1649, 4
      %v1813 = vadd.f32 %v1649, %v1812
      %v1814 = vrot.slane %v1813, 2
      %v1815 = vadd.f32 %v1813, %v1814
      %v1816 = vrot.slane %v1815, 1
      %v1817 = vadd.f32 %v1815, %v1816
      %v1818 = vrot.slane %v1651, 4
      %v1819 = vadd.f32 %v1651, %v1818
      %v1820 = vrot.slane %v1819, 2
      %v1821 = vadd.f32 %v1819, %v1820
      %v1822 = vrot.slane %v1821, 1
      %v1823 = vadd.f32 %v1821, %v1822
      %v1824 = vrot.slane %v1653, 4
      %v1825 = vadd.f32 %v1653, %v1824
      %v1826 = vrot.slane %v1825, 2
      %v1827 = vadd.f32 %v1825, %v1826
      %v1828 = vrot.slane %v1827, 1
      %v1829 = vadd.f32 %v1827, %v1828
      %v1830 = vrot.slane %v1655, 4
      %v1831 = vadd.f32 %v1655, %v1830
      %v1832 = vrot.slane %v1831, 2
      %v1833 = vadd.f32 %v1831, %v1832
      %v1834 = vrot.slane %v1833, 1
      %v1835 = vadd.f32 %v1833, %v1834
      %v1836 = vrot.slane %v1657, 4
      %v1837 = vadd.f32 %v1657, %v1836
      %v1838 = vrot.slane %v1837, 2
      %v1839 = vadd.f32 %v1837, %v1838
      %v1840 = vrot.slane %v1839, 1
      %v1841 = vadd.f32 %v1839, %v1840
      %v1842 = vrot.slane %v1659, 4
      %v1843 = vadd.f32 %v1659, %v1842
      %v1844 = vrot.slane %v1843, 2
      %v1845 = vadd.f32 %v1843, %v1844
      %v1846 = vrot.slane %v1845, 1
      %v1847 = vadd.f32 %v1845, %v1846
      %v1848 = vrot.slane %v1661, 4
      %v1849 = vadd.f32 %v1661, %v1848
      %v1850 = vrot.slane %v1849, 2
      %v1851 = vadd.f32 %v1849, %v1850
      %v1852 = vrot.slane %v1851, 1
      %v1853 = vadd.f32 %v1851, %v1852
      %v1854 = vrcp.pop %v1667
      %v1855 = vmul.f32 %v1599, %v1854
      %v1856 = vrcp.pop %v1673
      %v1857 = vmul.f32 %v1601, %v1856
      %v1858 = vrcp.pop %v1679
      %v1859 = vmul.f32 %v1603, %v1858
      %v1860 = vrcp.pop %v1685
      %v1861 = vmul.f32 %v1605, %v1860
      %v1862 = vrcp.pop %v1691
      %v1863 = vmul.f32 %v1607, %v1862
      %v1864 = vrcp.pop %v1697
      %v1865 = vmul.f32 %v1609, %v1864
      %v1866 = vrcp.pop %v1703
      %v1867 = vmul.f32 %v1611, %v1866
      %v1868 = vrcp.pop %v1709
      %v1869 = vmul.f32 %v1613, %v1868
      %v1870 = vrcp.pop %v1715
      %v1871 = vmul.f32 %v1615, %v1870
      %v1872 = vrcp.pop %v1721
      %v1873 = vmul.f32 %v1617, %v1872
      %v1874 = vrcp.pop %v1727
      %v1875 = vmul.f32 %v1619, %v1874
      %v1876 = vrcp.pop %v1733
      %v1877 = vmul.f32 %v1621, %v1876
      %v1878 = vrcp.pop %v1739
      %v1879 = vmul.f32 %v1623, %v1878
      %v1880 = vrcp.pop %v1745
      %v1881 = vmul.f32 %v1625, %v1880
      %v1882 = vrcp.pop %v1751
      %v1883 = vmul.f32 %v1627, %v1882
      %v1884 = vrcp.pop %v1757
      %v1885 = vmul.f32 %v1629, %v1884
      %v1886 = vrcp.pop %v1763
      %v1887 = vmul.f32 %v1631, %v1886
      %v1888 = vrcp.pop %v1769
      %v1889 = vmul.f32 %v1633, %v1888
      %v1890 = vrcp.pop %v1775
      %v1891 = vmul.f32 %v1635, %v1890
      %v1892 = vrcp.pop %v1781
      %v1893 = vmul.f32 %v1637, %v1892
      %v1894 = vrcp.pop %v1787
      %v1895 = vmul.f32 %v1639, %v1894
      %v1896 = vrcp.pop %v1793
      %v1897 = vmul.f32 %v1641, %v1896
      %v1898 = vrcp.pop %v1799
      %v1899 = vmul.f32 %v1643, %v1898
      %v1900 = vrcp.pop %v1805
      %v1901 = vmul.f32 %v1645, %v1900
      %v1902 = vrcp.pop %v1811
      %v1903 = vmul.f32 %v1647, %v1902
      %v1904 = vrcp.pop %v1817
      %v1905 = vmul.f32 %v1649, %v1904
      %v1906 = vrcp.pop %v1823
      %v1907 = vmul.f32 %v1651, %v1906
      %v1908 = vrcp.pop %v1829
      %v1909 = vmul.f32 %v1653, %v1908
      %v1910 = vrcp.pop %v1835
      %v1911 = vmul.f32 %v1655, %v1910
      %v1912 = vrcp.pop %v1841
      %v1913 = vmul.f32 %v1657, %v1912
      %v1914 = vrcp.pop %v1847
      %v1915 = vmul.f32 %v1659, %v1914
      %v1916 = vrcp.pop %v1853
      %v1917 = vmul.f32 %v1661, %v1916
      %1918 = vst [vmem:[%s280] sm:$0xff] %v1855
      %1919 = vst [vmem:[%s280 + $0x8] sm:$0xff] %v1857
      %1920 = vst [vmem:[%s280 + $0x10] sm:$0xff] %v1859
      %1921 = vst [vmem:[%s280 + $0x18] sm:$0xff] %v1861
      %1922 = vst [vmem:[%s280 + $0x20] sm:$0xff] %v1863
      %1923 = vst [vmem:[%s280 + $0x28] sm:$0xff] %v1865
      %1924 = vst [vmem:[%s280 + $0x30] sm:$0xff] %v1867
      %1925 = vst [vmem:[%s280 + $0x38] sm:$0xff] %v1869
      %1926 = vst [vmem:[%s280 + $0x40] sm:$0xff] %v1871
      %1927 = vst [vmem:[%s280 + $0x48] sm:$0xff] %v1873
      %1928 = vst [vmem:[%s280 + $0x50] sm:$0xff] %v1875
      %1929 = vst [vmem:[%s280 + $0x58] sm:$0xff] %v1877
      %1930 = vst [vmem:[%s280 + $0x60] sm:$0xff] %v1879
      %1931 = vst [vmem:[%s280 + $0x68] sm:$0xff] %v1881
      %1932 = vst [vmem:[%s280 + $0x70] sm:$0xff] %v1883
      %1933 = vst [vmem:[%s280 + $0x78] sm:$0xff] %v1885
      %1934 = vst [vmem:[%s280 + $0x80] sm:$0xff] %v1887
      %1935 = vst [vmem:[%s280 + $0x88] sm:$0xff] %v1889
      %1936 = vst [vmem:[%s280 + $0x90] sm:$0xff] %v1891
      %1937 = vst [vmem:[%s280 + $0x98] sm:$0xff] %v1893
      %1938 = vst [vmem:[%s280 + $0xa0] sm:$0xff] %v1895
      %1939 = vst [vmem:[%s280 + $0xa8] sm:$0xff] %v1897
      %1940 = vst [vmem:[%s280 + $0xb0] sm:$0xff] %v1899
      %1941 = vst [vmem:[%s280 + $0xb8] sm:$0xff] %v1901
      %1942 = vst [vmem:[%s280 + $0xc0] sm:$0xff] %v1903
      %1943 = vst [vmem:[%s280 + $0xc8] sm:$0xff] %v1905
      %1944 = vst [vmem:[%s280 + $0xd0] sm:$0xff] %v1907
      %1945 = vst [vmem:[%s280 + $0xd8] sm:$0xff] %v1909
      %1946 = vst [vmem:[%s280 + $0xe0] sm:$0xff] %v1911
      %1947 = vst [vmem:[%s280 + $0xe8] sm:$0xff] %v1913
      %1948 = vst [vmem:[%s280 + $0xf0] sm:$0xff] %v1915
      %1949 = vst [vmem:[%s280 + $0xf8] sm:$0xff] %v1917
      %s1950 = smul.u32 32, %s18
      %p1951 = scmp.lt.s32.totalorder %s1950, 63
      %s1952 = scalar_select %p1951, %s1950, 63
      %s1953 = smul.addr %s1952, 8
      %s1954 = scalar_lea.vmem %s7, %s1953
      // Predicated region
      $region49: #{neuralnet4_forward_batched.1} parent=47 // pred_check
        %p1955 = pneg %p188
      $region50: #{neuralnet4_forward_batched.1} parent=47 // pred_check_branch
        %1957 = sbr.rel (%p1955) target = $region52
      $region51: #{neuralnet4_forward_batched.1} parent=47 // pred_region
        %s1958 = smul.u32 32, %s18
      $region52: #{neuralnet4_forward_batched.1} parent=47 // pred_fallthru
        _
    $region48: #{neuralnet4_forward_batched.1} parent=5 // pred_fallthru
      _
    %p1959 = scmp.le.s32.totalorder 2, %s13
    // Predicated region
    $region53: #{neuralnet4_forward_batched.1} parent=5 // pred_check
      %p1960 = pneg %p1959
    $region54: #{neuralnet4_forward_batched.1} parent=5 // pred_check_branch
      %1962 = sbr.rel (%p1960) target = $region56
    $region55: #{neuralnet4_forward_batched.1} parent=5 // pred_region
      %s1963 = ssub.s32 %s13, 2
      // Predicated region
      $region57: #{neuralnet4_forward_batched.1} parent=55 // pred_check
        %p1964 = pneg %p194
      $region58: #{neuralnet4_forward_batched.1} parent=55 // pred_check_branch
        %1966 = sbr.rel (%p1964) target = $region60
      $region59: #{neuralnet4_forward_batched.1} parent=55 // pred_region
        %s1967 = smul.u32 32, %s19
        %p1968 = scmp.lt.s32.totalorder %s1967, 63
        %s1969 = scalar_select %p1968, %s1967, 63
        %s1970 = smul.addr %s1969, 8
        %s1971 = scalar_lea.vmem %s7, %s1970
      $region60: #{neuralnet4_forward_batched.1} parent=55 // pred_fallthru
        _
    $region56: #{neuralnet4_forward_batched.1} parent=5 // pred_fallthru
      _
  $region6: #{neuralnet4_forward_batched.1} parent=0 // loop_footer
    %s17 = sadd.s32 1, %s13
  $region7: #{neuralnet4_forward_batched.1} parent=0 // loop_footer_branch
    %12 = sbr.rel target = $region3
  $region8: #{neuralnet4_forward_batched.1} parent=0 // loop_exit
    _

</llo_original>
